<compile_context>
chip_gen: v6e
topology: v6e:2x2x1
jax: 0.10.0
libtpu: 0.0.40
codegen_flags: <defaults>
</compile_context>

<pallas_src>
import functools

import numpy as np
import jax
import jax.numpy as jnp
from jax.experimental import pallas as pl
from jax.experimental.pallas import tpu as pltpu


# ----------------------------- in-kernel helpers -----------------------------

def _layernorm(x, gamma, beta, eps):
    """LayerNorm over the last dim. x: (R, D); gamma/beta: (1, D)."""
    mu = jnp.mean(x, axis=-1, keepdims=True)
    xc = x - mu
    var = jnp.mean(xc * xc, axis=-1, keepdims=True)
    return xc * jax.lax.rsqrt(var + eps) * gamma + beta


def _erf(x):
    # Abramowitz & Stegun 7.1.26 rational approximation (max abs err ~1.5e-7),
    # lowers with only exp/mul/add/select inside Mosaic.
    ax = jnp.abs(x)
    t = 1.0 / (1.0 + 0.3275911 * ax)
    poly = ((((1.061405429 * t - 1.453152027) * t + 1.421413741) * t
             - 0.284496736) * t + 0.254829592) * t
    y = 1.0 - poly * jnp.exp(-ax * ax)
    return jnp.where(x < 0.0, -y, y)


def _gelu(x):
    # Exact (erf-based) GELU, matching torch.nn.GELU() default.
    return 0.5 * x * (1.0 + _erf(x * 0.7071067811865476))


# --------------------------------- kernel ------------------------------------

def _layer_kernel(heads, dim_head, eps,
                  x_ref,
                  ln1g_ref, ln1b_ref, wqkv_ref, wo_ref, bo_ref,
                  ln2g_ref, ln2b_ref, w1_ref, b1_ref, w2_ref, b2_ref,
                  fng_ref, fnb_ref,
                  out_ref,
                  xs_ref):
    """One Transformer layer per grid step; grid = (batch_tiles, depth)."""
    l = pl.program_id(1)
    bt, N, D = x_ref.shape
    R = bt * N
    inner = heads * dim_head

    # Residual stream lives in f32 scratch; (re)load the input at layer 0.
    @pl.when(l == 0)
    def _():
        xs_ref[...] = x_ref[...].astype(jnp.float32).reshape(R, D)

    x = xs_ref[...]

    # ---------------- Attention sublayer (pre-LN) ----------------
    xn = _layernorm(x, ln1g_ref[0], ln1b_ref[0], eps)
    # Fused Q/K/V projection: one (R, D) @ (D, 3*inner) bf16 MXU matmul.
    # The attention scale is already folded into the Q columns of Wqkv.
    qkv = jnp.dot(xn.astype(jnp.bfloat16), wqkv_ref[0],
                  preferred_element_type=jnp.float32)            # (R, 3*inner) f32

    ctxs = []
    for h in range(heads):                       # static unroll over heads
        lo = h * dim_head
        hi = lo + dim_head
        qh = qkv[:, lo:hi].reshape(bt, N, dim_head)
        kh = qkv[:, inner + lo:inner + hi].reshape(bt, N, dim_head)
        vh = qkv[:, 2 * inner + lo:2 * inner + hi].reshape(bt, N, dim_head)
        # scores: batched over the batch tile ('bqd,bkd->bqk'); f32 (tiny dh).
        s = jax.lax.dot_general(qh, kh, (((2,), (2,)), ((0,), (0,))),
                                preferred_element_type=jnp.float32)
        s = s - jnp.max(s, axis=-1, keepdims=True)
        e = jnp.exp(s)
        p = e * pl.reciprocal(jnp.sum(e, axis=-1, keepdims=True), approx=True)
        ctx = jax.lax.dot_general(p, vh, (((2,), (1,)), ((0,), (0,))),
                                  preferred_element_type=jnp.float32)   # (bt,N,dh)
        ctxs.append(ctx.reshape(R, dim_head))
    # One K=inner output projection instead of `heads` K=dim_head matmuls.
    ctx_all = jnp.concatenate(ctxs, axis=-1)                     # (R, inner)
    attn = jnp.dot(ctx_all.astype(jnp.bfloat16), wo_ref[0],
                   preferred_element_type=jnp.float32)
    x = x + attn + bo_ref[0]                     # residual (+ out-proj bias)

    # ---------------- FeedForward sublayer (pre-LN) ----------------
    xn2 = _layernorm(x, ln2g_ref[0], ln2b_ref[0], eps)
    hdn = jnp.dot(xn2.astype(jnp.bfloat16), w1_ref[0],
                  preferred_element_type=jnp.float32) + b1_ref[0]
    hdn = _gelu(hdn)
    ffo = jnp.dot(hdn.astype(jnp.bfloat16), w2_ref[0],
                  preferred_element_type=jnp.float32) + b2_ref[0]
    x = x + ffo                                  # residual
    xs_ref[...] = x

    # Final LayerNorm + output store only after the last layer.
    @pl.when(l == pl.num_programs(1) - 1)
    def _():
        y = _layernorm(x, fng_ref[...], fnb_ref[...], eps)
        out_ref[...] = y.reshape(bt, N, D).astype(out_ref.dtype)


# --------------------------------- wrapper ------------------------------------

def prepare_params(params, *, heads, dim_head):
    """One-time parameter prep for the kernel: fold the attention scale into
    the Q columns of Wqkv^T and cast all matmul weights to bf16."""
    inner = heads * dim_head
    scale = float(dim_head) ** -0.5
    wqkv = params["wqkv_t"].at[:, :, :inner].multiply(scale)
    prepped = dict(params)
    prepped["wqkv_t"] = wqkv.astype(jnp.bfloat16)
    prepped["wo_t"] = params["wo_t"].astype(jnp.bfloat16)
    prepped["w1_t"] = params["w1_t"].astype(jnp.bfloat16)
    prepped["w2_t"] = params["w2_t"].astype(jnp.bfloat16)
    return prepped


def transformer_pallas(x, prepped, *, heads, dim_head, eps=1e-5, batch_tile=1):
    """Full Transformer forward: grid over (batch tiles, depth)."""
    B, N, D = x.shape
    depth = prepped["ln1_g"].shape[0]
    inner = heads * dim_head
    mlp_dim = prepped["w1_t"].shape[-1]
    # TODO(synk): heads==1 and dim_head==dim (Identity out-projection) branch of
    # the PyTorch module is not implemented here.
    assert not (heads == 1 and dim_head == D)
    assert B % batch_tile == 0

    kernel = functools.partial(_layer_kernel, heads, dim_head, float(eps))

    # Per-layer tensors: block index follows the depth grid axis -> Pallas
    # double-buffers layer l+1 weight DMA under layer l compute.
    def lyr(shape):
        return pl.BlockSpec((1,) + shape,
                            lambda b, l, _s=len(shape): (l,) + (0,) * _s)

    x_spec = pl.BlockSpec((batch_tile, N, D), lambda b, l: (b, 0, 0))
    fin_spec = pl.BlockSpec((1, D), lambda b, l: (0, 0))

    grid_spec = pltpu.PrefetchScalarGridSpec(
        num_scalar_prefetch=0,
        grid=(B // batch_tile, depth),
        in_specs=[
            x_spec,                               # x
            lyr((1, D)), lyr((1, D)),             # attn LN gamma / beta (f32)
            lyr((D, 3 * inner)),                  # Wqkv^T (scale folded, bf16)
            lyr((inner, D)),                      # Wo^T (bf16)
            lyr((1, D)),                          # bo (f32)
            lyr((1, D)), lyr((1, D)),             # ff LN gamma / beta (f32)
            lyr((D, mlp_dim)),                    # W1^T (bf16)
            lyr((1, mlp_dim)),                    # b1 (f32)
            lyr((mlp_dim, D)),                    # W2^T (bf16)
            lyr((1, D)),                          # b2 (f32)
            fin_spec, fin_spec,                   # final LN gamma / beta (f32)
        ],
        out_specs=pl.BlockSpec((batch_tile, N, D), lambda b, l: (b, 0, 0)),
        scratch_shapes=[pltpu.VMEM((batch_tile * N, D), jnp.float32)],
    )

    # Advisory cost estimate for the XLA scheduler.
    flops = int(2 * depth * B * N * (4 * D * inner + 2 * N * inner + 2 * D * mlp_dim))
    transcendentals = int(depth * B * N * (heads * N + mlp_dim))
    weight_bytes = int(depth * (2 * (4 * D * inner + 2 * D * mlp_dim)
                                + 4 * (6 * D + mlp_dim)) + 8 * D)
    act_bytes = int(2 * B * N * D * x.dtype.itemsize)
    cost = pl.CostEstimate(flops=flops, transcendentals=transcendentals,
                           bytes_accessed=weight_bytes + act_bytes)

    return pl.pallas_call(
        kernel,
        out_shape=jax.ShapeDtypeStruct((B, N, D), x.dtype),
        grid_spec=grid_spec,
        compiler_params=pltpu.CompilerParams(
            dimension_semantics=("parallel", "arbitrary"),
            vmem_limit_bytes=32 * 1024 * 1024),
        cost_estimate=cost,
    )(x,
      prepped["ln1_g"], prepped["ln1_b"], prepped["wqkv_t"], prepped["wo_t"],
      prepped["bo"], prepped["ln2_g"], prepped["ln2_b"], prepped["w1_t"],
      prepped["b1"], prepped["w2_t"], prepped["b2"],
      prepped["fn_g"], prepped["fn_b"])


# ------------------------- synthetic parameter init ---------------------------

def init_params(key, *, dim, depth, heads, dim_head, mlp_dim):
    """Deterministic synthetic parameters (f32, pre-transposed, stacked per layer)."""
    inner = heads * dim_head
    per_layer = 11
    keys = jax.random.split(key, depth * per_layer + 2)

    ln1_g, ln1_b, wqkv_t, wo_t, bo = [], [], [], [], []
    ln2_g, ln2_b, w1_t, b1, w2_t, b2 = [], [], [], [], [], []
    for l in range(depth):
        ks = keys[l * per_layer:(l + 1) * per_layer]
        ln1_g.append(1.0 + 0.1 * jax.random.normal(ks[0], (1, dim), jnp.float32))
        ln1_b.append(0.1 * jax.random.normal(ks[1], (1, dim), jnp.float32))
        w_qkv = jax.random.normal(ks[2], (3 * inner, dim), jnp.float32) / np.sqrt(dim)
        wqkv_t.append(w_qkv.T)                               # (dim, 3*inner)
        w_o = jax.random.normal(ks[3], (dim, inner), jnp.float32) / np.sqrt(inner)
        wo_t.append(w_o.T)                                   # (inner, dim)
        bo.append(0.05 * jax.random.normal(ks[4], (1, dim), jnp.float32))
        ln2_g.append(1.0 + 0.1 * jax.random.normal(ks[5], (1, dim), jnp.float32))
        ln2_b.append(0.1 * jax.random.normal(ks[6], (1, dim), jnp.float32))
        w_1 = jax.random.normal(ks[7], (mlp_dim, dim), jnp.float32) / np.sqrt(dim)
        w1_t.append(w_1.T)                                   # (dim, mlp_dim)
        b1.append(0.05 * jax.random.normal(ks[8], (1, mlp_dim), jnp.float32))
        w_2 = jax.random.normal(ks[9], (dim, mlp_dim), jnp.float32) / np.sqrt(mlp_dim)
        w2_t.append(w_2.T)                                   # (mlp_dim, dim)
        b2.append(0.05 * jax.random.normal(ks[10], (1, dim), jnp.float32))

    fn_g = 1.0 + 0.1 * jax.random.normal(keys[-2], (1, dim), jnp.float32)
    fn_b = 0.1 * jax.random.normal(keys[-1], (1, dim), jnp.float32)

    return dict(
        ln1_g=jnp.stack(ln1_g), ln1_b=jnp.stack(ln1_b),
        wqkv_t=jnp.stack(wqkv_t), wo_t=jnp.stack(wo_t), bo=jnp.stack(bo),
        ln2_g=jnp.stack(ln2_g), ln2_b=jnp.stack(ln2_b),
        w1_t=jnp.stack(w1_t), b1=jnp.stack(b1),
        w2_t=jnp.stack(w2_t), b2=jnp.stack(b2),
        fn_g=fn_g, fn_b=fn_b)


# ---------------- pure-JAX reference (for correctness check) ------------------

def _transformer_ref(x, p, *, heads, dim_head, eps=1e-5):
    hp = jax.lax.Precision.HIGHEST

    def ln(t, g, b):
        mu = t.mean(-1, keepdims=True)
        var = ((t - mu) ** 2).mean(-1, keepdims=True)
        return (t - mu) / jnp.sqrt(var + eps) * g + b

    B, N, D = x.shape
    depth = p["ln1_g"].shape[0]
    inner = heads * dim_head
    scale = float(dim_head) ** -0.5
    for l in range(depth):
        xn = ln(x, p["ln1_g"][l], p["ln1_b"][l])
        qkv = jnp.einsum("bnd,de->bne", xn, p["wqkv_t"][l], precision=hp)
        q, k, v = jnp.split(qkv, 3, axis=-1)
        sp = lambda t: t.reshape(B, N, heads, dim_head).transpose(0, 2, 1, 3)
        qh, kh, vh = sp(q), sp(k), sp(v)
        s = jnp.einsum("bhnd,bhmd->bhnm", qh, kh, precision=hp) * scale
        a = jax.nn.softmax(s, axis=-1)
        o = jnp.einsum("bhnm,bhmd->bhnd", a, vh, precision=hp)
        o = o.transpose(0, 2, 1, 3).reshape(B, N, inner)
        x = x + jnp.einsum("bnd,de->bne", o, p["wo_t"][l], precision=hp) + p["bo"][l]
        xn2 = ln(x, p["ln2_g"][l], p["ln2_b"][l])
        h = jnp.einsum("bnd,de->bne", xn2, p["w1_t"][l], precision=hp) + p["b1"][l]
        h = jax.nn.gelu(h, approximate=False)
        x = x + jnp.einsum("bne,ed->bnd", h, p["w2_t"][l], precision=hp) + p["b2"][l]
    return ln(x, p["fn_g"], p["fn_b"])


# ----------------------------------- main --------------------------------------

if __name__ == "__main__":
    B, N = 2, 8                   # batch, sequence length (num patches)
    dim, depth = 32, 2
    heads, dim_head, mlp_dim = 4, 8, 64

    key = jax.random.PRNGKey(0)
    k_params, k_x = jax.random.split(key)
    params = init_params(k_params, dim=dim, depth=depth, heads=heads,
                         dim_head=dim_head, mlp_dim=mlp_dim)
    x = jax.random.normal(k_x, (B, N, dim), jnp.float32)

    prepped = prepare_params(params, heads=heads, dim_head=dim_head)
    out = transformer_pallas(x, prepped, heads=heads, dim_head=dim_head)
    out = jax.block_until_ready(out)

    ref = _transformer_ref(x, params, heads=heads, dim_head=dim_head)
    ref = jax.block_until_ready(ref)

    assert out.shape == (B, N, dim)
    # Tolerance covers the bf16 matmul operands (f32 accumulate / LN / softmax /
    # residual stream) vs the f32 exact-erf reference.
    max_err = float(jnp.max(jnp.abs(out - ref)))
    assert np.allclose(np.asarray(out), np.asarray(ref), atol=3e-2, rtol=3e-2), \
        f"max abs err = {max_err}"
    print("KERNEL_OK")
</pallas_src>

<mosaic_0001>
module attributes {stable_mosaic.version = 11 : i64} {
  func.func @_layer_kernel(%arg0: i32, %arg1: i32, %arg2: memref<1x8x32xf32, #tpu.memory_space<vmem>>, %arg3: memref<1x1x32xf32, #tpu.memory_space<vmem>>, %arg4: memref<1x1x32xf32, #tpu.memory_space<vmem>>, %arg5: memref<1x32x96xbf16, #tpu.memory_space<vmem>>, %arg6: memref<1x32x32xbf16, #tpu.memory_space<vmem>>, %arg7: memref<1x1x32xf32, #tpu.memory_space<vmem>>, %arg8: memref<1x1x32xf32, #tpu.memory_space<vmem>>, %arg9: memref<1x1x32xf32, #tpu.memory_space<vmem>>, %arg10: memref<1x32x64xbf16, #tpu.memory_space<vmem>>, %arg11: memref<1x1x64xf32, #tpu.memory_space<vmem>>, %arg12: memref<1x64x32xbf16, #tpu.memory_space<vmem>>, %arg13: memref<1x1x32xf32, #tpu.memory_space<vmem>>, %arg14: memref<1x32xf32, #tpu.memory_space<vmem>>, %arg15: memref<1x32xf32, #tpu.memory_space<vmem>>, %arg16: memref<1x8x32xf32, #tpu.memory_space<vmem>>, %arg17: memref<8x32xf32, #tpu.memory_space<vmem>>) attributes {dimension_semantics = [#tpu.dimension_semantics<parallel>, #tpu.dimension_semantics<arbitrary>], iteration_bounds = array<i64: 2, 2>, scalar_prefetch = 0 : i64, scratch_operands = 1 : i64, tpu.core_type = #tpu.core_type<tc>, window_params = [{transform_indices = @transform_0, window_bounds = array<i64: 1, 8, 32>}, {transform_indices = @transform_1, window_bounds = array<i64: 1, 1, 32>}, {transform_indices = @transform_2, window_bounds = array<i64: 1, 1, 32>}, {transform_indices = @transform_3, window_bounds = array<i64: 1, 32, 96>}, {transform_indices = @transform_4, window_bounds = array<i64: 1, 32, 32>}, {transform_indices = @transform_5, window_bounds = array<i64: 1, 1, 32>}, {transform_indices = @transform_6, window_bounds = array<i64: 1, 1, 32>}, {transform_indices = @transform_7, window_bounds = array<i64: 1, 1, 32>}, {transform_indices = @transform_8, window_bounds = array<i64: 1, 32, 64>}, {transform_indices = @transform_9, window_bounds = array<i64: 1, 1, 64>}, {transform_indices = @transform_10, window_bounds = array<i64: 1, 64, 32>}, {transform_indices = @transform_11, window_bounds = array<i64: 1, 1, 32>}, {pipeline_mode = #tpu.pipeline_mode<synchronous>, transform_indices = @transform_12, window_bounds = array<i64: 1, 32>}, {pipeline_mode = #tpu.pipeline_mode<synchronous>, transform_indices = @transform_13, window_bounds = array<i64: 1, 32>}, {transform_indices = @transform_14, window_bounds = array<i64: 1, 8, 32>}]} {
    %c0_i32 = arith.constant 0 : i32
    %0 = arith.cmpi eq, %arg1, %c0_i32 : i32
    %1 = arith.extui %0 : i1 to i32
    %c0_i32_0 = arith.constant 0 : i32
    %2 = arith.cmpi ne, %1, %c0_i32_0 : i32
    scf.if %2 {
      %c0_82 = arith.constant 0 : index
      %c0_83 = arith.constant 0 : index
      %c0_84 = arith.constant 0 : index
      %203 = vector.load %arg2[%c0_82, %c0_83, %c0_84] : memref<1x8x32xf32, #tpu.memory_space<vmem>>, vector<1x8x32xf32>
      %204 = vector.shape_cast %203 : vector<1x8x32xf32> to vector<8x32xf32>
      %c0_85 = arith.constant 0 : index
      %c0_86 = arith.constant 0 : index
      %205 = vector.load %arg17[%c0_85, %c0_86] : memref<8x32xf32, #tpu.memory_space<vmem>>, vector<8x32xf32>
      tpu.vector_store %arg17[%c0_85, %c0_86], %204 {strides = array<i32>} : memref<8x32xf32, #tpu.memory_space<vmem>>, vector<8x32xf32>,
    } else {
    }
    %c0 = arith.constant 0 : index
    %c0_1 = arith.constant 0 : index
    %3 = vector.load %arg17[%c0, %c0_1] : memref<8x32xf32, #tpu.memory_space<vmem>>, vector<8x32xf32>
    %c0_2 = arith.constant 0 : index
    %c0_3 = arith.constant 0 : index
    %c0_4 = arith.constant 0 : index
    %4 = vector.load %arg3[%c0_2, %c0_3, %c0_4] : memref<1x1x32xf32, #tpu.memory_space<vmem>>, vector<1x1x32xf32>
    %5 = vector.shape_cast %4 : vector<1x1x32xf32> to vector<1x32xf32>
    %c0_5 = arith.constant 0 : index
    %c0_6 = arith.constant 0 : index
    %c0_7 = arith.constant 0 : index
    %6 = vector.load %arg4[%c0_5, %c0_6, %c0_7] : memref<1x1x32xf32, #tpu.memory_space<vmem>>, vector<1x1x32xf32>
    %7 = vector.shape_cast %6 : vector<1x1x32xf32> to vector<1x32xf32>
    %cst = arith.constant dense<0.000000e+00> : vector<8xf32>
    %8 = vector.multi_reduction <add>, %3, %cst [1] : vector<8x32xf32> to vector<8xf32>
    %9 = vector.shape_cast %8 : vector<8xf32> to vector<8x1xf32>
    %cst_8 = arith.constant 3.200000e+01 : f32
    %10 = vector.broadcast %cst_8 : f32 to vector<8x1xf32>
    %11 = arith.divf %9, %10 : vector<8x1xf32>
    %12 = vector.broadcast %11 : vector<8x1xf32> to vector<8x32xf32>
    %13 = arith.subf %3, %12 : vector<8x32xf32>
    %14 = arith.mulf %13, %13 : vector<8x32xf32>
    %cst_9 = arith.constant dense<0.000000e+00> : vector<8xf32>
    %15 = vector.multi_reduction <add>, %14, %cst_9 [1] : vector<8x32xf32> to vector<8xf32>
    %16 = vector.shape_cast %15 : vector<8xf32> to vector<8x1xf32>
    %cst_10 = arith.constant 3.200000e+01 : f32
    %17 = vector.broadcast %cst_10 : f32 to vector<8x1xf32>
    %18 = arith.divf %16, %17 : vector<8x1xf32>
    %cst_11 = arith.constant 9.99999974E-6 : f32
    %19 = vector.broadcast %cst_11 : f32 to vector<8x1xf32>
    %20 = arith.addf %18, %19 : vector<8x1xf32>
    %21 = math.rsqrt %20 : vector<8x1xf32>
    %22 = vector.broadcast %21 : vector<8x1xf32> to vector<8x32xf32>
    %23 = arith.mulf %13, %22 : vector<8x32xf32>
    %24 = vector.broadcast %5 : vector<1x32xf32> to vector<8x32xf32>
    %25 = arith.mulf %23, %24 : vector<8x32xf32>
    %26 = vector.broadcast %7 : vector<1x32xf32> to vector<8x32xf32>
    %27 = arith.addf %25, %26 : vector<8x32xf32>
    %28 = arith.truncf %27 : vector<8x32xf32> to vector<8x32xbf16>
    %c0_12 = arith.constant 0 : index
    %c0_13 = arith.constant 0 : index
    %c0_14 = arith.constant 0 : index
    %29 = vector.load %arg5[%c0_12, %c0_13, %c0_14] : memref<1x32x96xbf16, #tpu.memory_space<vmem>>, vector<1x32x96xbf16>
    %30 = vector.shape_cast %29 : vector<1x32x96xbf16> to vector<32x96xbf16>
    %cst_15 = arith.constant dense<0.000000e+00> : vector<8x96xf32>
    %31 = tpu.matmul %28, %30, %cst_15 {dimension_numbers = #tpu.dot_dimension_numbers<[1], [0], [0], [1], [0, 0, 1, 1], [], []>} : vector<8x32xbf16>, vector<32x96xbf16>, vector<8x96xf32> -> vector<8x96xf32>
    %32 = vector.extract_strided_slice %31 {offsets = [0, 0], sizes = [8, 8], strides = [1, 1]} : vector<8x96xf32> to vector<8x8xf32>
    %33 = vector.shape_cast %32 : vector<8x8xf32> to vector<1x8x8xf32>
    %34 = vector.extract_strided_slice %31 {offsets = [0, 32], sizes = [8, 8], strides = [1, 1]} : vector<8x96xf32> to vector<8x8xf32>
    %35 = vector.shape_cast %34 : vector<8x8xf32> to vector<1x8x8xf32>
    %36 = vector.extract_strided_slice %31 {offsets = [0, 64], sizes = [8, 8], strides = [1, 1]} : vector<8x96xf32> to vector<8x8xf32>
    %37 = vector.shape_cast %36 : vector<8x8xf32> to vector<1x8x8xf32>
    %cst_16 = arith.constant dense<0.000000e+00> : vector<1x8x8xf32>
    %38 = tpu.matmul %33, %35, %cst_16 {dimension_numbers = #tpu.dot_dimension_numbers<[2], [2], [1], [1], [0, 0, 0, 1, 1, 1], [0], [0]>} : vector<1x8x8xf32>, vector<1x8x8xf32>, vector<1x8x8xf32> -> vector<1x8x8xf32>
    %cst_17 = arith.constant dense<0xFF800000> : vector<1x8xf32>
    %39 = vector.multi_reduction <maximumf>, %38, %cst_17 [2] : vector<1x8x8xf32> to vector<1x8xf32>
    %40 = vector.shape_cast %39 : vector<1x8xf32> to vector<1x8x1xf32>
    %41 = vector.broadcast %40 : vector<1x8x1xf32> to vector<1x8x8xf32>
    %42 = arith.subf %38, %41 : vector<1x8x8xf32>
    %43 = math.exp %42 : vector<1x8x8xf32>
    %cst_18 = arith.constant dense<0.000000e+00> : vector<1x8xf32>
    %44 = vector.multi_reduction <add>, %43, %cst_18 [2] : vector<1x8x8xf32> to vector<1x8xf32>
    %45 = vector.shape_cast %44 : vector<1x8xf32> to vector<1x8x1xf32>
    %46 = tpu.reciprocal %45 {approx = true} : vector<1x8x1xf32> -> vector<1x8x1xf32>
    %47 = vector.broadcast %46 : vector<1x8x1xf32> to vector<1x8x8xf32>
    %48 = arith.mulf %43, %47 : vector<1x8x8xf32>
    %cst_19 = arith.constant dense<0.000000e+00> : vector<1x8x8xf32>
    %49 = tpu.matmul %48, %37, %cst_19 {dimension_numbers = #tpu.dot_dimension_numbers<[2], [1], [1], [2], [0, 0, 0, 1, 1, 2], [0], [0]>} : vector<1x8x8xf32>, vector<1x8x8xf32>, vector<1x8x8xf32> -> vector<1x8x8xf32>
    %50 = vector.shape_cast %49 : vector<1x8x8xf32> to vector<8x8xf32>
    %51 = vector.extract_strided_slice %31 {offsets = [0, 8], sizes = [8, 8], strides = [1, 1]} : vector<8x96xf32> to vector<8x8xf32>
    %52 = vector.shape_cast %51 : vector<8x8xf32> to vector<1x8x8xf32>
    %53 = vector.extract_strided_slice %31 {offsets = [0, 40], sizes = [8, 8], strides = [1, 1]} : vector<8x96xf32> to vector<8x8xf32>
    %54 = vector.shape_cast %53 : vector<8x8xf32> to vector<1x8x8xf32>
    %55 = vector.extract_strided_slice %31 {offsets = [0, 72], sizes = [8, 8], strides = [1, 1]} : vector<8x96xf32> to vector<8x8xf32>
    %56 = vector.shape_cast %55 : vector<8x8xf32> to vector<1x8x8xf32>
    %cst_20 = arith.constant dense<0.000000e+00> : vector<1x8x8xf32>
    %57 = tpu.matmul %52, %54, %cst_20 {dimension_numbers = #tpu.dot_dimension_numbers<[2], [2], [1], [1], [0, 0, 0, 1, 1, 1], [0], [0]>} : vector<1x8x8xf32>, vector<1x8x8xf32>, vector<1x8x8xf32> -> vector<1x8x8xf32>
    %cst_21 = arith.constant dense<0xFF800000> : vector<1x8xf32>
    %58 = vector.multi_reduction <maximumf>, %57, %cst_21 [2] : vector<1x8x8xf32> to vector<1x8xf32>
    %59 = vector.shape_cast %58 : vector<1x8xf32> to vector<1x8x1xf32>
    %60 = vector.broadcast %59 : vector<1x8x1xf32> to vector<1x8x8xf32>
    %61 = arith.subf %57, %60 : vector<1x8x8xf32>
    %62 = math.exp %61 : vector<1x8x8xf32>
    %cst_22 = arith.constant dense<0.000000e+00> : vector<1x8xf32>
    %63 = vector.multi_reduction <add>, %62, %cst_22 [2] : vector<1x8x8xf32> to vector<1x8xf32>
    %64 = vector.shape_cast %63 : vector<1x8xf32> to vector<1x8x1xf32>
    %65 = tpu.reciprocal %64 {approx = true} : vector<1x8x1xf32> -> vector<1x8x1xf32>
    %66 = vector.broadcast %65 : vector<1x8x1xf32> to vector<1x8x8xf32>
    %67 = arith.mulf %62, %66 : vector<1x8x8xf32>
    %cst_23 = arith.constant dense<0.000000e+00> : vector<1x8x8xf32>
    %68 = tpu.matmul %67, %56, %cst_23 {dimension_numbers = #tpu.dot_dimension_numbers<[2], [1], [1], [2], [0, 0, 0, 1, 1, 2], [0], [0]>} : vector<1x8x8xf32>, vector<1x8x8xf32>, vector<1x8x8xf32> -> vector<1x8x8xf32>
    %69 = vector.shape_cast %68 : vector<1x8x8xf32> to vector<8x8xf32>
    %70 = vector.extract_strided_slice %31 {offsets = [0, 16], sizes = [8, 8], strides = [1, 1]} : vector<8x96xf32> to vector<8x8xf32>
    %71 = vector.shape_cast %70 : vector<8x8xf32> to vector<1x8x8xf32>
    %72 = vector.extract_strided_slice %31 {offsets = [0, 48], sizes = [8, 8], strides = [1, 1]} : vector<8x96xf32> to vector<8x8xf32>
    %73 = vector.shape_cast %72 : vector<8x8xf32> to vector<1x8x8xf32>
    %74 = vector.extract_strided_slice %31 {offsets = [0, 80], sizes = [8, 8], strides = [1, 1]} : vector<8x96xf32> to vector<8x8xf32>
    %75 = vector.shape_cast %74 : vector<8x8xf32> to vector<1x8x8xf32>
    %cst_24 = arith.constant dense<0.000000e+00> : vector<1x8x8xf32>
    %76 = tpu.matmul %71, %73, %cst_24 {dimension_numbers = #tpu.dot_dimension_numbers<[2], [2], [1], [1], [0, 0, 0, 1, 1, 1], [0], [0]>} : vector<1x8x8xf32>, vector<1x8x8xf32>, vector<1x8x8xf32> -> vector<1x8x8xf32>
    %cst_25 = arith.constant dense<0xFF800000> : vector<1x8xf32>
    %77 = vector.multi_reduction <maximumf>, %76, %cst_25 [2] : vector<1x8x8xf32> to vector<1x8xf32>
    %78 = vector.shape_cast %77 : vector<1x8xf32> to vector<1x8x1xf32>
    %79 = vector.broadcast %78 : vector<1x8x1xf32> to vector<1x8x8xf32>
    %80 = arith.subf %76, %79 : vector<1x8x8xf32>
    %81 = math.exp %80 : vector<1x8x8xf32>
    %cst_26 = arith.constant dense<0.000000e+00> : vector<1x8xf32>
    %82 = vector.multi_reduction <add>, %81, %cst_26 [2] : vector<1x8x8xf32> to vector<1x8xf32>
    %83 = vector.shape_cast %82 : vector<1x8xf32> to vector<1x8x1xf32>
    %84 = tpu.reciprocal %83 {approx = true} : vector<1x8x1xf32> -> vector<1x8x1xf32>
    %85 = vector.broadcast %84 : vector<1x8x1xf32> to vector<1x8x8xf32>
    %86 = arith.mulf %81, %85 : vector<1x8x8xf32>
    %cst_27 = arith.constant dense<0.000000e+00> : vector<1x8x8xf32>
    %87 = tpu.matmul %86, %75, %cst_27 {dimension_numbers = #tpu.dot_dimension_numbers<[2], [1], [1], [2], [0, 0, 0, 1, 1, 2], [0], [0]>} : vector<1x8x8xf32>, vector<1x8x8xf32>, vector<1x8x8xf32> -> vector<1x8x8xf32>
    %88 = vector.shape_cast %87 : vector<1x8x8xf32> to vector<8x8xf32>
    %89 = vector.extract_strided_slice %31 {offsets = [0, 24], sizes = [8, 8], strides = [1, 1]} : vector<8x96xf32> to vector<8x8xf32>
    %90 = vector.shape_cast %89 : vector<8x8xf32> to vector<1x8x8xf32>
    %91 = vector.extract_strided_slice %31 {offsets = [0, 56], sizes = [8, 8], strides = [1, 1]} : vector<8x96xf32> to vector<8x8xf32>
    %92 = vector.shape_cast %91 : vector<8x8xf32> to vector<1x8x8xf32>
    %93 = vector.extract_strided_slice %31 {offsets = [0, 88], sizes = [8, 8], strides = [1, 1]} : vector<8x96xf32> to vector<8x8xf32>
    %94 = vector.shape_cast %93 : vector<8x8xf32> to vector<1x8x8xf32>
    %cst_28 = arith.constant dense<0.000000e+00> : vector<1x8x8xf32>
    %95 = tpu.matmul %90, %92, %cst_28 {dimension_numbers = #tpu.dot_dimension_numbers<[2], [2], [1], [1], [0, 0, 0, 1, 1, 1], [0], [0]>} : vector<1x8x8xf32>, vector<1x8x8xf32>, vector<1x8x8xf32> -> vector<1x8x8xf32>
    %cst_29 = arith.constant dense<0xFF800000> : vector<1x8xf32>
    %96 = vector.multi_reduction <maximumf>, %95, %cst_29 [2] : vector<1x8x8xf32> to vector<1x8xf32>
    %97 = vector.shape_cast %96 : vector<1x8xf32> to vector<1x8x1xf32>
    %98 = vector.broadcast %97 : vector<1x8x1xf32> to vector<1x8x8xf32>
    %99 = arith.subf %95, %98 : vector<1x8x8xf32>
    %100 = math.exp %99 : vector<1x8x8xf32>
    %cst_30 = arith.constant dense<0.000000e+00> : vector<1x8xf32>
    %101 = vector.multi_reduction <add>, %100, %cst_30 [2] : vector<1x8x8xf32> to vector<1x8xf32>
    %102 = vector.shape_cast %101 : vector<1x8xf32> to vector<1x8x1xf32>
    %103 = tpu.reciprocal %102 {approx = true} : vector<1x8x1xf32> -> vector<1x8x1xf32>
    %104 = vector.broadcast %103 : vector<1x8x1xf32> to vector<1x8x8xf32>
    %105 = arith.mulf %100, %104 : vector<1x8x8xf32>
    %cst_31 = arith.constant dense<0.000000e+00> : vector<1x8x8xf32>
    %106 = tpu.matmul %105, %94, %cst_31 {dimension_numbers = #tpu.dot_dimension_numbers<[2], [1], [1], [2], [0, 0, 0, 1, 1, 2], [0], [0]>} : vector<1x8x8xf32>, vector<1x8x8xf32>, vector<1x8x8xf32> -> vector<1x8x8xf32>
    %107 = vector.shape_cast %106 : vector<1x8x8xf32> to vector<8x8xf32>
    %108 = tpu.concatenate %50, %69, %88, %107 in 1 : vector<8x8xf32>, vector<8x8xf32>, vector<8x8xf32>, vector<8x8xf32> -> vector<8x32xf32>
    %109 = arith.truncf %108 : vector<8x32xf32> to vector<8x32xbf16>
    %c0_32 = arith.constant 0 : index
    %c0_33 = arith.constant 0 : index
    %c0_34 = arith.constant 0 : index
    %110 = vector.load %arg6[%c0_32, %c0_33, %c0_34] : memref<1x32x32xbf16, #tpu.memory_space<vmem>>, vector<1x32x32xbf16>
    %111 = vector.shape_cast %110 : vector<1x32x32xbf16> to vector<32x32xbf16>
    %cst_35 = arith.constant dense<0.000000e+00> : vector<8x32xf32>
    %112 = tpu.matmul %109, %111, %cst_35 {dimension_numbers = #tpu.dot_dimension_numbers<[1], [0], [0], [1], [0, 0, 1, 1], [], []>} : vector<8x32xbf16>, vector<32x32xbf16>, vector<8x32xf32> -> vector<8x32xf32>
    %113 = arith.addf %3, %112 : vector<8x32xf32>
    %c0_36 = arith.constant 0 : index
    %c0_37 = arith.constant 0 : index
    %c0_38 = arith.constant 0 : index
    %114 = vector.load %arg7[%c0_36, %c0_37, %c0_38] : memref<1x1x32xf32, #tpu.memory_space<vmem>>, vector<1x1x32xf32>
    %115 = vector.shape_cast %114 : vector<1x1x32xf32> to vector<1x32xf32>
    %116 = vector.broadcast %115 : vector<1x32xf32> to vector<8x32xf32>
    %117 = arith.addf %113, %116 : vector<8x32xf32>
    %c0_39 = arith.constant 0 : index
    %c0_40 = arith.constant 0 : index
    %c0_41 = arith.constant 0 : index
    %118 = vector.load %arg8[%c0_39, %c0_40, %c0_41] : memref<1x1x32xf32, #tpu.memory_space<vmem>>, vector<1x1x32xf32>
    %119 = vector.shape_cast %118 : vector<1x1x32xf32> to vector<1x32xf32>
    %c0_42 = arith.constant 0 : index
    %c0_43 = arith.constant 0 : index
    %c0_44 = arith.constant 0 : index
    %120 = vector.load %arg9[%c0_42, %c0_43, %c0_44] : memref<1x1x32xf32, #tpu.memory_space<vmem>>, vector<1x1x32xf32>
    %121 = vector.shape_cast %120 : vector<1x1x32xf32> to vector<1x32xf32>
    %cst_45 = arith.constant dense<0.000000e+00> : vector<8xf32>
    %122 = vector.multi_reduction <add>, %117, %cst_45 [1] : vector<8x32xf32> to vector<8xf32>
    %123 = vector.shape_cast %122 : vector<8xf32> to vector<8x1xf32>
    %cst_46 = arith.constant 3.200000e+01 : f32
    %124 = vector.broadcast %cst_46 : f32 to vector<8x1xf32>
    %125 = arith.divf %123, %124 : vector<8x1xf32>
    %126 = vector.broadcast %125 : vector<8x1xf32> to vector<8x32xf32>
    %127 = arith.subf %117, %126 : vector<8x32xf32>
    %128 = arith.mulf %127, %127 : vector<8x32xf32>
    %cst_47 = arith.constant dense<0.000000e+00> : vector<8xf32>
    %129 = vector.multi_reduction <add>, %128, %cst_47 [1] : vector<8x32xf32> to vector<8xf32>
    %130 = vector.shape_cast %129 : vector<8xf32> to vector<8x1xf32>
    %cst_48 = arith.constant 3.200000e+01 : f32
    %131 = vector.broadcast %cst_48 : f32 to vector<8x1xf32>
    %132 = arith.divf %130, %131 : vector<8x1xf32>
    %cst_49 = arith.constant 9.99999974E-6 : f32
    %133 = vector.broadcast %cst_49 : f32 to vector<8x1xf32>
    %134 = arith.addf %132, %133 : vector<8x1xf32>
    %135 = math.rsqrt %134 : vector<8x1xf32>
    %136 = vector.broadcast %135 : vector<8x1xf32> to vector<8x32xf32>
    %137 = arith.mulf %127, %136 : vector<8x32xf32>
    %138 = vector.broadcast %119 : vector<1x32xf32> to vector<8x32xf32>
    %139 = arith.mulf %137, %138 : vector<8x32xf32>
    %140 = vector.broadcast %121 : vector<1x32xf32> to vector<8x32xf32>
    %141 = arith.addf %139, %140 : vector<8x32xf32>
    %142 = arith.truncf %141 : vector<8x32xf32> to vector<8x32xbf16>
    %c0_50 = arith.constant 0 : index
    %c0_51 = arith.constant 0 : index
    %c0_52 = arith.constant 0 : index
    %143 = vector.load %arg10[%c0_50, %c0_51, %c0_52] : memref<1x32x64xbf16, #tpu.memory_space<vmem>>, vector<1x32x64xbf16>
    %144 = vector.shape_cast %143 : vector<1x32x64xbf16> to vector<32x64xbf16>
    %cst_53 = arith.constant dense<0.000000e+00> : vector<8x64xf32>
    %145 = tpu.matmul %142, %144, %cst_53 {dimension_numbers = #tpu.dot_dimension_numbers<[1], [0], [0], [1], [0, 0, 1, 1], [], []>} : vector<8x32xbf16>, vector<32x64xbf16>, vector<8x64xf32> -> vector<8x64xf32>
    %c0_54 = arith.constant 0 : index
    %c0_55 = arith.constant 0 : index
    %c0_56 = arith.constant 0 : index
    %146 = vector.load %arg11[%c0_54, %c0_55, %c0_56] : memref<1x1x64xf32, #tpu.memory_space<vmem>>, vector<1x1x64xf32>
    %147 = vector.shape_cast %146 : vector<1x1x64xf32> to vector<1x64xf32>
    %148 = vector.broadcast %147 : vector<1x64xf32> to vector<8x64xf32>
    %149 = arith.addf %145, %148 : vector<8x64xf32>
    %cst_57 = arith.constant 5.000000e-01 : f32
    %150 = vector.broadcast %cst_57 : f32 to vector<8x64xf32>
    %151 = arith.mulf %150, %149 : vector<8x64xf32>
    %cst_58 = arith.constant 0.707106769 : f32
    %152 = vector.broadcast %cst_58 : f32 to vector<8x64xf32>
    %153 = arith.mulf %149, %152 : vector<8x64xf32>
    %154 = math.absf %153 : vector<8x64xf32>
    %cst_59 = arith.constant 0.327591091 : f32
    %155 = vector.broadcast %cst_59 : f32 to vector<8x64xf32>
    %156 = arith.mulf %155, %154 : vector<8x64xf32>
    %cst_60 = arith.constant 1.000000e+00 : f32
    %157 = vector.broadcast %cst_60 : f32 to vector<8x64xf32>
    %158 = arith.addf %157, %156 : vector<8x64xf32>
    %cst_61 = arith.constant 1.000000e+00 : f32
    %159 = vector.broadcast %cst_61 : f32 to vector<8x64xf32>
    %160 = arith.divf %159, %158 : vector<8x64xf32>
    %cst_62 = arith.constant 1.06140542 : f32
    %161 = vector.broadcast %cst_62 : f32 to vector<8x64xf32>
    %162 = arith.mulf %161, %160 : vector<8x64xf32>
    %cst_63 = arith.constant 1.45315206 : f32
    %163 = vector.broadcast %cst_63 : f32 to vector<8x64xf32>
    %164 = arith.subf %162, %163 : vector<8x64xf32>
    %165 = arith.mulf %164, %160 : vector<8x64xf32>
    %cst_64 = arith.constant 1.42141378 : f32
    %166 = vector.broadcast %cst_64 : f32 to vector<8x64xf32>
    %167 = arith.addf %165, %166 : vector<8x64xf32>
    %168 = arith.mulf %167, %160 : vector<8x64xf32>
    %cst_65 = arith.constant 0.284496725 : f32
    %169 = vector.broadcast %cst_65 : f32 to vector<8x64xf32>
    %170 = arith.subf %168, %169 : vector<8x64xf32>
    %171 = arith.mulf %170, %160 : vector<8x64xf32>
    %cst_66 = arith.constant 0.254829586 : f32
    %172 = vector.broadcast %cst_66 : f32 to vector<8x64xf32>
    %173 = arith.addf %171, %172 : vector<8x64xf32>
    %174 = arith.mulf %173, %160 : vector<8x64xf32>
    %cst_67 = arith.constant 0.000000e+00 : f32
    %175 = vector.broadcast %cst_67 : f32 to vector<8x64xf32>
    %176 = arith.subf %175, %154 : vector<8x64xf32>
    %177 = arith.mulf %176, %154 : vector<8x64xf32>
    %178 = math.exp %177 : vector<8x64xf32>
    %179 = arith.mulf %174, %178 : vector<8x64xf32>
    %cst_68 = arith.constant 1.000000e+00 : f32
    %180 = vector.broadcast %cst_68 : f32 to vector<8x64xf32>
    %181 = arith.subf %180, %179 : vector<8x64xf32>
    %cst_69 = arith.constant 0.000000e+00 : f32
    %182 = vector.broadcast %cst_69 : f32 to vector<8x64xf32>
    %183 = arith.cmpf olt, %153, %182 : vector<8x64xf32>
    %cst_70 = arith.constant 0.000000e+00 : f32
    %184 = vector.broadcast %cst_70 : f32 to vector<8x64xf32>
    %185 = arith.subf %184, %181 : vector<8x64xf32>
    %186 = arith.select %183, %185, %181 : vector<8x64xi1>, vector<8x64xf32>
    %cst_71 = arith.constant 1.000000e+00 : f32
    %187 = vector.broadcast %cst_71 : f32 to vector<8x64xf32>
    %188 = arith.addf %187, %186 : vector<8x64xf32>
    %189 = arith.mulf %151, %188 : vector<8x64xf32>
    %190 = arith.truncf %189 : vector<8x64xf32> to vector<8x64xbf16>
    %c0_72 = arith.constant 0 : index
    %c0_73 = arith.constant 0 : index
    %c0_74 = arith.constant 0 : index
    %191 = vector.load %arg12[%c0_72, %c0_73, %c0_74] : memref<1x64x32xbf16, #tpu.memory_space<vmem>>, vector<1x64x32xbf16>
    %192 = vector.shape_cast %191 : vector<1x64x32xbf16> to vector<64x32xbf16>
    %cst_75 = arith.constant dense<0.000000e+00> : vector<8x32xf32>
    %193 = tpu.matmul %190, %192, %cst_75 {dimension_numbers = #tpu.dot_dimension_numbers<[1], [0], [0], [1], [0, 0, 1, 1], [], []>} : vector<8x64xbf16>, vector<64x32xbf16>, vector<8x32xf32> -> vector<8x32xf32>
    %c0_76 = arith.constant 0 : index
    %c0_77 = arith.constant 0 : index
    %c0_78 = arith.constant 0 : index
    %194 = vector.load %arg13[%c0_76, %c0_77, %c0_78] : memref<1x1x32xf32, #tpu.memory_space<vmem>>, vector<1x1x32xf32>
    %195 = vector.shape_cast %194 : vector<1x1x32xf32> to vector<1x32xf32>
    %196 = vector.broadcast %195 : vector<1x32xf32> to vector<8x32xf32>
    %197 = arith.addf %193, %196 : vector<8x32xf32>
    %198 = arith.addf %117, %197 : vector<8x32xf32>
    %c0_79 = arith.constant 0 : index
    %c0_80 = arith.constant 0 : index
    %199 = vector.load %arg17[%c0_79, %c0_80] : memref<8x32xf32, #tpu.memory_space<vmem>>, vector<8x32xf32>
    tpu.vector_store %arg17[%c0_79, %c0_80], %198 {strides = array<i32>} : memref<8x32xf32, #tpu.memory_space<vmem>>, vector<8x32xf32>,
    %c1_i32 = arith.constant 1 : i32
    %200 = arith.cmpi eq, %arg1, %c1_i32 : i32
    %201 = arith.extui %200 : i1 to i32
    %c0_i32_81 = arith.constant 0 : i32
    %202 = arith.cmpi ne, %201, %c0_i32_81 : i32
    scf.if %202 {
      %c0_82 = arith.constant 0 : index
      %c0_83 = arith.constant 0 : index
      %203 = vector.load %arg14[%c0_82, %c0_83] : memref<1x32xf32, #tpu.memory_space<vmem>>, vector<1x32xf32>
      %c0_84 = arith.constant 0 : index
      %c0_85 = arith.constant 0 : index
      %204 = vector.load %arg15[%c0_84, %c0_85] : memref<1x32xf32, #tpu.memory_space<vmem>>, vector<1x32xf32>
      %cst_86 = arith.constant dense<0.000000e+00> : vector<8xf32>
      %205 = vector.multi_reduction <add>, %198, %cst_86 [1] : vector<8x32xf32> to vector<8xf32>
      %206 = vector.shape_cast %205 : vector<8xf32> to vector<8x1xf32>
      %cst_87 = arith.constant 3.200000e+01 : f32
      %207 = vector.broadcast %cst_87 : f32 to vector<8x1xf32>
      %208 = arith.divf %206, %207 : vector<8x1xf32>
      %209 = vector.broadcast %208 : vector<8x1xf32> to vector<8x32xf32>
      %210 = arith.subf %198, %209 : vector<8x32xf32>
      %211 = arith.mulf %210, %210 : vector<8x32xf32>
      %cst_88 = arith.constant dense<0.000000e+00> : vector<8xf32>
      %212 = vector.multi_reduction <add>, %211, %cst_88 [1] : vector<8x32xf32> to vector<8xf32>
      %213 = vector.shape_cast %212 : vector<8xf32> to vector<8x1xf32>
      %cst_89 = arith.constant 3.200000e+01 : f32
      %214 = vector.broadcast %cst_89 : f32 to vector<8x1xf32>
      %215 = arith.divf %213, %214 : vector<8x1xf32>
      %cst_90 = arith.constant 9.99999974E-6 : f32
      %216 = vector.broadcast %cst_90 : f32 to vector<8x1xf32>
      %217 = arith.addf %215, %216 : vector<8x1xf32>
      %218 = math.rsqrt %217 : vector<8x1xf32>
      %219 = vector.broadcast %218 : vector<8x1xf32> to vector<8x32xf32>
      %220 = arith.mulf %210, %219 : vector<8x32xf32>
      %221 = vector.broadcast %203 : vector<1x32xf32> to vector<8x32xf32>
      %222 = arith.mulf %220, %221 : vector<8x32xf32>
      %223 = vector.broadcast %204 : vector<1x32xf32> to vector<8x32xf32>
      %224 = arith.addf %222, %223 : vector<8x32xf32>
      %225 = vector.shape_cast %224 : vector<8x32xf32> to vector<1x8x32xf32>
      %c0_91 = arith.constant 0 : index
      %c0_92 = arith.constant 0 : index
      %c0_93 = arith.constant 0 : index
      %226 = vector.load %arg16[%c0_91, %c0_92, %c0_93] : memref<1x8x32xf32, #tpu.memory_space<vmem>>, vector<1x8x32xf32>
      tpu.vector_store %arg16[%c0_91, %c0_92, %c0_93], %225 {strides = array<i32>} : memref<1x8x32xf32, #tpu.memory_space<vmem>>, vector<1x8x32xf32>,
    } else {
    }
    return
  }
  func.func @transform_0(%arg0: i32, %arg1: i32) -> (i32, i32, i32) {
    %c0_i32 = arith.constant 0 : i32
    %c0_i32_0 = arith.constant 0 : i32
    %c0_i32_1 = arith.constant 0 : i32
    return %arg0, %c0_i32, %c0_i32_0 : i32, i32, i32
  }
  func.func @transform_1(%arg0: i32, %arg1: i32) -> (i32, i32, i32) {
    %c0_i32 = arith.constant 0 : i32
    %c0_i32_0 = arith.constant 0 : i32
    %c0_i32_1 = arith.constant 0 : i32
    return %arg1, %c0_i32, %c0_i32_0 : i32, i32, i32
  }
  func.func @transform_2(%arg0: i32, %arg1: i32) -> (i32, i32, i32) {
    %c0_i32 = arith.constant 0 : i32
    %c0_i32_0 = arith.constant 0 : i32
    %c0_i32_1 = arith.constant 0 : i32
    return %arg1, %c0_i32, %c0_i32_0 : i32, i32, i32
  }
  func.func @transform_3(%arg0: i32, %arg1: i32) -> (i32, i32, i32) {
    %c0_i32 = arith.constant 0 : i32
    %c0_i32_0 = arith.constant 0 : i32
    %c0_i32_1 = arith.constant 0 : i32
    return %arg1, %c0_i32, %c0_i32_0 : i32, i32, i32
  }
  func.func @transform_4(%arg0: i32, %arg1: i32) -> (i32, i32, i32) {
    %c0_i32 = arith.constant 0 : i32
    %c0_i32_0 = arith.constant 0 : i32
    %c0_i32_1 = arith.constant 0 : i32
    return %arg1, %c0_i32, %c0_i32_0 : i32, i32, i32
  }
  func.func @transform_5(%arg0: i32, %arg1: i32) -> (i32, i32, i32) {
    %c0_i32 = arith.constant 0 : i32
    %c0_i32_0 = arith.constant 0 : i32
    %c0_i32_1 = arith.constant 0 : i32
    return %arg1, %c0_i32, %c0_i32_0 : i32, i32, i32
  }
  func.func @transform_6(%arg0: i32, %arg1: i32) -> (i32, i32, i32) {
    %c0_i32 = arith.constant 0 : i32
    %c0_i32_0 = arith.constant 0 : i32
    %c0_i32_1 = arith.constant 0 : i32
    return %arg1, %c0_i32, %c0_i32_0 : i32, i32, i32
  }
  func.func @transform_7(%arg0: i32, %arg1: i32) -> (i32, i32, i32) {
    %c0_i32 = arith.constant 0 : i32
    %c0_i32_0 = arith.constant 0 : i32
    %c0_i32_1 = arith.constant 0 : i32
    return %arg1, %c0_i32, %c0_i32_0 : i32, i32, i32
  }
  func.func @transform_8(%arg0: i32, %arg1: i32) -> (i32, i32, i32) {
    %c0_i32 = arith.constant 0 : i32
    %c0_i32_0 = arith.constant 0 : i32
    %c0_i32_1 = arith.constant 0 : i32
    return %arg1, %c0_i32, %c0_i32_0 : i32, i32, i32
  }
  func.func @transform_9(%arg0: i32, %arg1: i32) -> (i32, i32, i32) {
    %c0_i32 = arith.constant 0 : i32
    %c0_i32_0 = arith.constant 0 : i32
    %c0_i32_1 = arith.constant 0 : i32
    return %arg1, %c0_i32, %c0_i32_0 : i32, i32, i32
  }
  func.func @transform_10(%arg0: i32, %arg1: i32) -> (i32, i32, i32) {
    %c0_i32 = arith.constant 0 : i32
    %c0_i32_0 = arith.constant 0 : i32
    %c0_i32_1 = arith.constant 0 : i32
    return %arg1, %c0_i32, %c0_i32_0 : i32, i32, i32
  }
  func.func @transform_11(%arg0: i32, %arg1: i32) -> (i32, i32, i32) {
    %c0_i32 = arith.constant 0 : i32
    %c0_i32_0 = arith.constant 0 : i32
    %c0_i32_1 = arith.constant 0 : i32
    return %arg1, %c0_i32, %c0_i32_0 : i32, i32, i32
  }
  func.func @transform_12(%arg0: i32, %arg1: i32) -> (i32, i32) {
    %c0_i32 = arith.constant 0 : i32
    %c0_i32_0 = arith.constant 0 : i32
    %c0_i32_1 = arith.constant 0 : i32
    return %c0_i32, %c0_i32_0 : i32, i32
  }
  func.func @transform_13(%arg0: i32, %arg1: i32) -> (i32, i32) {
    %c0_i32 = arith.constant 0 : i32
    %c0_i32_0 = arith.constant 0 : i32
    %c0_i32_1 = arith.constant 0 : i32
    return %c0_i32, %c0_i32_0 : i32, i32
  }
  func.func @transform_14(%arg0: i32, %arg1: i32) -> (i32, i32, i32) {
    %c0_i32 = arith.constant 0 : i32
    %c0_i32_0 = arith.constant 0 : i32
    %c0_i32_1 = arith.constant 0 : i32
    return %arg0, %c0_i32, %c0_i32_0 : i32, i32, i32
  }
}

</mosaic_0001>

<llo_original>
// kernel: tpu_custom_call.1
$region0: #{tpu_custom_call.1}
  #allocation0 [shape = 'u32[]', space=smem, size = 0x4, offset = 0x4, fixed_abs, tag = 'smem constant byte address 0x4 - core index']
  #allocation1 [shape = 'u32[144,128]{1,0:T(1,128)}', space=vmem, size = 0x12000, scoped, tag = 'internal scratch']
  #allocation2 [shape = 'f32[8,32]{1,0:T(8,128)}', space=vmem, size = 0x1000, scoped, tag = 'scratch operand']
  %s0 = inlined_call_operand.hbm [shape: f32[2,8,32], index: 0, kind: input, shape index: {}]
  %s1 = inlined_call_operand.hbm [shape: f32[2,1,32], index: 1, kind: input, shape index: {}]
  %s2 = inlined_call_operand.vmem [shape: f32[2,1,32], index: 2, kind: input, shape index: {}]
  %s3 = inlined_call_operand.vmem [shape: bf16[2,32,96], index: 3, kind: input, shape index: {}]
  %s4 = inlined_call_operand.vmem [shape: bf16[2,32,32], index: 4, kind: input, shape index: {}]
  %s5 = inlined_call_operand.vmem [shape: f32[2,1,32], index: 5, kind: input, shape index: {}]
  %s6 = inlined_call_operand.vmem [shape: f32[2,1,32], index: 6, kind: input, shape index: {}]
  %s7 = inlined_call_operand.vmem [shape: f32[2,1,32], index: 7, kind: input, shape index: {}]
  %s8 = inlined_call_operand.vmem [shape: bf16[2,32,64], index: 8, kind: input, shape index: {}]
  %s9 = inlined_call_operand.vmem [shape: f32[2,1,64], index: 9, kind: input, shape index: {}]
  %s10 = inlined_call_operand.vmem [shape: bf16[2,64,32], index: 10, kind: input, shape index: {}]
  %s11 = inlined_call_operand.vmem [shape: f32[2,1,32], index: 11, kind: input, shape index: {}]
  %s12 = inlined_call_operand.vmem [shape: f32[1,32], index: 12, kind: input, shape index: {}]
  %s13 = inlined_call_operand.vmem [shape: f32[1,32], index: 13, kind: input, shape index: {}]
  %s14 = inlined_call_operand.hbm [shape: f32[2,8,32], index: 14, kind: output, shape index: {}]
  %s15 = sld [smem:[#allocation0]]
  $region105: #{tpu_custom_call.1} parent=0
    _
  %s17 = ssub.s32 1, %s15
  %s18 = scalar_select 0, %s17, %s15
  $region1: #{tpu_custom_call.1} parent=0
    #allocation3 [shape = 'u8[8192]{0}', space=vmem, size = 0x2000, scoped, tag = 'input window, operand 0']
    #allocation4 [shape = 's32[2]{0}', space=sflag, size = 0x8, scoped, tag = 'scoped memory for tpu_custom_call.1']
    #allocation5 [shape = 's32[2]{0}', space=sflag, size = 0x8, scoped, tag = 'scoped memory for tpu_custom_call.1']
    #allocation6 [shape = 'u8[1024]{0}', space=vmem, size = 0x400, scoped, tag = 'input window, operand 1']
    #allocation7 [shape = 's32[2]{0}', space=sflag, size = 0x8, scoped, tag = 'scoped memory for tpu_custom_call.1']
    #allocation8 [shape = 'u8[8192]{0}', space=vmem, size = 0x2000, scoped, tag = 'output window, operand 0']
    %19 = vsyncpa [#allocation4], 0
    %s20 = scalar_lea.sflag [#allocation4], 1
    %21 = vsyncpa %s20, 0
    %22 = vsyncpa [#allocation7], 0
    %s23 = scalar_lea.sflag [#allocation7], 1
    %24 = vsyncpa %s23, 0
    %25 = vsyncpa [#allocation5], 0
    %s26 = scalar_lea.sflag [#allocation5], 1
    %27 = vsyncpa %s26, 0
    loop: start=0, step=1, limit=6
    $region2: #{tpu_custom_call.1} parent=1 // loop_pre_header
      _
    $region3: #{tpu_custom_call.1} parent=1 // loop_header
      %s29 = sphi 0, %s33
      %p30 = scmp.ge.s32.totalorder %s29, 6
      %s36 = sphi 0, %s48
      %s37 = sphi 0, %s44
      %s38 = sphi 0, %s36
      %s39 = sphi 0, %s37
      %s40 = sphi 0, %s38
      %s41 = sphi 0, %s39
      %s51 = sphi 0, %s53
      %s54 = sphi 0, %s51
      %s55 = sphi 0, %s54
      %s71 = sphi 0, %s55
      %s77 = sphi 0, %s79
      %s80 = sphi 0, %s77
      %s81 = sphi 0, %s80
      %s97 = sphi 0, %s81
      %s103 = sphi 0, %s105
      %s106 = sphi 0, %s103
      %s107 = sphi 0, %s106
      %s123 = sphi 0, %s107
      %s129 = sphi 0, %s131
      %s132 = sphi 0, %s129
      %s133 = sphi 0, %s132
      %s149 = sphi 0, %s133
      %s155 = sphi 0, %s157
      %s158 = sphi 0, %s155
      %s159 = sphi 0, %s158
      %s175 = sphi 0, %s159
      %s181 = sphi 0, %s183
      %s184 = sphi 0, %s181
      %s185 = sphi 0, %s184
      %s201 = sphi 0, %s185
      %s207 = sphi 0, %s209
      %s210 = sphi 0, %s207
      %s211 = sphi 0, %s210
      %s227 = sphi 0, %s211
      %s233 = sphi 0, %s235
      %s236 = sphi 0, %s233
      %s237 = sphi 0, %s236
      %s253 = sphi 0, %s237
      %s259 = sphi 0, %s261
      %s262 = sphi 0, %s259
      %s263 = sphi 0, %s262
      %s279 = sphi 0, %s263
      %s285 = sphi 0, %s287
      %s288 = sphi 0, %s285
      %s289 = sphi 0, %s288
      %s305 = sphi 0, %s289
      %s311 = sphi 0, %s313
      %s314 = sphi 0, %s311
      %s315 = sphi 0, %s314
      %s331 = sphi 0, %s315
      %s337 = sphi 0, %s339
      %s340 = sphi 0, %s337
      %s341 = sphi 0, %s340
      %s357 = sphi 0, %s341
      %s361 = sphi 0, %s361
      %s363 = sphi 0, %s361
      %s364 = sphi 0, %s363
      %s378 = sphi 0, %s364
      %s382 = sphi 0, %s382
      %s384 = sphi 0, %s382
      %s385 = sphi 0, %s384
      %s399 = sphi 0, %s385
      %s405 = sphi 0, %s407
      %s408 = sphi 0, %s405
      %s409 = sphi 0, %s408
      %s425 = sphi 0, %s409
    $region4: #{tpu_custom_call.1} parent=1 // loop_header_branch
      %32 = sbr.rel (%p30) target = $region8
    $region5: #{tpu_custom_call.1} parent=1 // loop_body
      %s34 = ssub.s32 %s29, 1
      %s35 = ssub.s32 %s29, 2
      %s42 = sadd.s32 1, %s37
      %p43 = scmp.ge.s32.totalorder %s42, 2
      %s44 = scalar_select %p43, 0, %s42
      %s45 = sadd.s32 1, %s36
      %s46 = scalar_select %p43, %s45, %s36
      %p47 = scmp.ge.s32.totalorder %s46, 2
      %s48 = scalar_select %p47, 0, %s46
      %s49 = ssub.s32 %s36, %s48
      %p50 = scmp.eq.s32.totalorder %s49, 0
      %s52 = sadd.s32 %s51, 1
      %s53 = scalar_select %p50, %s51, %s52
      %p56 = pneg %p50
      %p57 = scmp.eq.s32.totalorder %s29, 3
      %p58 = por %p56, %p57
      %p59 = scmp.ne.s32.totalorder %s51, %s54
      %p60 = scmp.eq.s32.totalorder %s29, 0
      %p61 = por %p59, %p60
      %p62 = scmp.ne.s32.totalorder %s51, %s54
      %p63 = scmp.eq.s32.totalorder %s34, 3
      %p64 = por %p62, %p63
      %p65 = scmp.ne.s32.totalorder %s54, %s55
      %p66 = scmp.eq.s32.totalorder %s34, 0
      %p67 = por %p65, %p66
      %p68 = scmp.ne.s32.totalorder %s54, %s55
      %p69 = scmp.eq.s32.totalorder %s35, 3
      %p70 = por %p68, %p69
      %p72 = scmp.ne.s32.totalorder %s55, %s71
      %p73 = scmp.eq.s32.totalorder %s35, 0
      %p74 = por %p72, %p73
      %s75 = ssub.s32 %s37, %s44
      %p76 = scmp.eq.s32.totalorder %s75, 0
      %s78 = sadd.s32 %s77, 1
      %s79 = scalar_select %p76, %s77, %s78
      %p82 = pneg %p76
      %p83 = scmp.eq.s32.totalorder %s29, 3
      %p84 = por %p82, %p83
      %p85 = scmp.ne.s32.totalorder %s77, %s80
      %p86 = scmp.eq.s32.totalorder %s29, 0
      %p87 = por %p85, %p86
      %p88 = scmp.ne.s32.totalorder %s77, %s80
      %p89 = scmp.eq.s32.totalorder %s34, 3
      %p90 = por %p88, %p89
      %p91 = scmp.ne.s32.totalorder %s80, %s81
      %p92 = scmp.eq.s32.totalorder %s34, 0
      %p93 = por %p91, %p92
      %p94 = scmp.ne.s32.totalorder %s80, %s81
      %p95 = scmp.eq.s32.totalorder %s35, 3
      %p96 = por %p94, %p95
      %p98 = scmp.ne.s32.totalorder %s81, %s97
      %p99 = scmp.eq.s32.totalorder %s35, 0
      %p100 = por %p98, %p99
      %s101 = ssub.s32 %s37, %s44
      %p102 = scmp.eq.s32.totalorder %s101, 0
      %s104 = sadd.s32 %s103, 1
      %s105 = scalar_select %p102, %s103, %s104
      %p108 = pneg %p102
      %p109 = scmp.eq.s32.totalorder %s29, 3
      %p110 = por %p108, %p109
      %p111 = scmp.ne.s32.totalorder %s103, %s106
      %p112 = scmp.eq.s32.totalorder %s29, 0
      %p113 = por %p111, %p112
      %p114 = scmp.ne.s32.totalorder %s103, %s106
      %p115 = scmp.eq.s32.totalorder %s34, 3
      %p116 = por %p114, %p115
      %p117 = scmp.ne.s32.totalorder %s106, %s107
      %p118 = scmp.eq.s32.totalorder %s34, 0
      %p119 = por %p117, %p118
      %p120 = scmp.ne.s32.totalorder %s106, %s107
      %p121 = scmp.eq.s32.totalorder %s35, 3
      %p122 = por %p120, %p121
      %p124 = scmp.ne.s32.totalorder %s107, %s123
      %p125 = scmp.eq.s32.totalorder %s35, 0
      %p126 = por %p124, %p125
      %s127 = ssub.s32 %s37, %s44
      %p128 = scmp.eq.s32.totalorder %s127, 0
      %s130 = sadd.s32 %s129, 1
      %s131 = scalar_select %p128, %s129, %s130
      %p134 = pneg %p128
      %p135 = scmp.eq.s32.totalorder %s29, 3
      %p136 = por %p134, %p135
      %p137 = scmp.ne.s32.totalorder %s129, %s132
      %p138 = scmp.eq.s32.totalorder %s29, 0
      %p139 = por %p137, %p138
      %p140 = scmp.ne.s32.totalorder %s129, %s132
      %p141 = scmp.eq.s32.totalorder %s34, 3
      %p142 = por %p140, %p141
      %p143 = scmp.ne.s32.totalorder %s132, %s133
      %p144 = scmp.eq.s32.totalorder %s34, 0
      %p145 = por %p143, %p144
      %p146 = scmp.ne.s32.totalorder %s132, %s133
      %p147 = scmp.eq.s32.totalorder %s35, 3
      %p148 = por %p146, %p147
      %p150 = scmp.ne.s32.totalorder %s133, %s149
      %p151 = scmp.eq.s32.totalorder %s35, 0
      %p152 = por %p150, %p151
      %s153 = ssub.s32 %s37, %s44
      %p154 = scmp.eq.s32.totalorder %s153, 0
      %s156 = sadd.s32 %s155, 1
      %s157 = scalar_select %p154, %s155, %s156
      %p160 = pneg %p154
      %p161 = scmp.eq.s32.totalorder %s29, 3
      %p162 = por %p160, %p161
      %p163 = scmp.ne.s32.totalorder %s155, %s158
      %p164 = scmp.eq.s32.totalorder %s29, 0
      %p165 = por %p163, %p164
      %p166 = scmp.ne.s32.totalorder %s155, %s158
      %p167 = scmp.eq.s32.totalorder %s34, 3
      %p168 = por %p166, %p167
      %p169 = scmp.ne.s32.totalorder %s158, %s159
      %p170 = scmp.eq.s32.totalorder %s34, 0
      %p171 = por %p169, %p170
      %p172 = scmp.ne.s32.totalorder %s158, %s159
      %p173 = scmp.eq.s32.totalorder %s35, 3
      %p174 = por %p172, %p173
      %p176 = scmp.ne.s32.totalorder %s159, %s175
      %p177 = scmp.eq.s32.totalorder %s35, 0
      %p178 = por %p176, %p177
      %s179 = ssub.s32 %s37, %s44
      %p180 = scmp.eq.s32.totalorder %s179, 0
      %s182 = sadd.s32 %s181, 1
      %s183 = scalar_select %p180, %s181, %s182
      %p186 = pneg %p180
      %p187 = scmp.eq.s32.totalorder %s29, 3
      %p188 = por %p186, %p187
      %p189 = scmp.ne.s32.totalorder %s181, %s184
      %p190 = scmp.eq.s32.totalorder %s29, 0
      %p191 = por %p189, %p190
      %p192 = scmp.ne.s32.totalorder %s181, %s184
      %p193 = scmp.eq.s32.totalorder %s34, 3
      %p194 = por %p192, %p193
      %p195 = scmp.ne.s32.totalorder %s184, %s185
      %p196 = scmp.eq.s32.totalorder %s34, 0
      %p197 = por %p195, %p196
      %p198 = scmp.ne.s32.totalorder %s184, %s185
      %p199 = scmp.eq.s32.totalorder %s35, 3
      %p200 = por %p198, %p199
      %p202 = scmp.ne.s32.totalorder %s185, %s201
      %p203 = scmp.eq.s32.totalorder %s35, 0
      %p204 = por %p202, %p203
      %s205 = ssub.s32 %s37, %s44
      %p206 = scmp.eq.s32.totalorder %s205, 0
      %s208 = sadd.s32 %s207, 1
      %s209 = scalar_select %p206, %s207, %s208
      %p212 = pneg %p206
      %p213 = scmp.eq.s32.totalorder %s29, 3
      %p214 = por %p212, %p213
      %p215 = scmp.ne.s32.totalorder %s207, %s210
      %p216 = scmp.eq.s32.totalorder %s29, 0
      %p217 = por %p215, %p216
      %p218 = scmp.ne.s32.totalorder %s207, %s210
      %p219 = scmp.eq.s32.totalorder %s34, 3
      %p220 = por %p218, %p219
      %p221 = scmp.ne.s32.totalorder %s210, %s211
      %p222 = scmp.eq.s32.totalorder %s34, 0
      %p223 = por %p221, %p222
      %p224 = scmp.ne.s32.totalorder %s210, %s211
      %p225 = scmp.eq.s32.totalorder %s35, 3
      %p226 = por %p224, %p225
      %p228 = scmp.ne.s32.totalorder %s211, %s227
      %p229 = scmp.eq.s32.totalorder %s35, 0
      %p230 = por %p228, %p229
      %s231 = ssub.s32 %s37, %s44
      %p232 = scmp.eq.s32.totalorder %s231, 0
      %s234 = sadd.s32 %s233, 1
      %s235 = scalar_select %p232, %s233, %s234
      %p238 = pneg %p232
      %p239 = scmp.eq.s32.totalorder %s29, 3
      %p240 = por %p238, %p239
      %p241 = scmp.ne.s32.totalorder %s233, %s236
      %p242 = scmp.eq.s32.totalorder %s29, 0
      %p243 = por %p241, %p242
      %p244 = scmp.ne.s32.totalorder %s233, %s236
      %p245 = scmp.eq.s32.totalorder %s34, 3
      %p246 = por %p244, %p245
      %p247 = scmp.ne.s32.totalorder %s236, %s237
      %p248 = scmp.eq.s32.totalorder %s34, 0
      %p249 = por %p247, %p248
      %p250 = scmp.ne.s32.totalorder %s236, %s237
      %p251 = scmp.eq.s32.totalorder %s35, 3
      %p252 = por %p250, %p251
      %p254 = scmp.ne.s32.totalorder %s237, %s253
      %p255 = scmp.eq.s32.totalorder %s35, 0
      %p256 = por %p254, %p255
      %s257 = ssub.s32 %s37, %s44
      %p258 = scmp.eq.s32.totalorder %s257, 0
      %s260 = sadd.s32 %s259, 1
      %s261 = scalar_select %p258, %s259, %s260
      %p264 = pneg %p258
      %p265 = scmp.eq.s32.totalorder %s29, 3
      %p266 = por %p264, %p265
      %p267 = scmp.ne.s32.totalorder %s259, %s262
      %p268 = scmp.eq.s32.totalorder %s29, 0
      %p269 = por %p267, %p268
      %p270 = scmp.ne.s32.totalorder %s259, %s262
      %p271 = scmp.eq.s32.totalorder %s34, 3
      %p272 = por %p270, %p271
      %p273 = scmp.ne.s32.totalorder %s262, %s263
      %p274 = scmp.eq.s32.totalorder %s34, 0
      %p275 = por %p273, %p274
      %p276 = scmp.ne.s32.totalorder %s262, %s263
      %p277 = scmp.eq.s32.totalorder %s35, 3
      %p278 = por %p276, %p277
      %p280 = scmp.ne.s32.totalorder %s263, %s279
      %p281 = scmp.eq.s32.totalorder %s35, 0
      %p282 = por %p280, %p281
      %s283 = ssub.s32 %s37, %s44
      %p284 = scmp.eq.s32.totalorder %s283, 0
      %s286 = sadd.s32 %s285, 1
      %s287 = scalar_select %p284, %s285, %s286
      %p290 = pneg %p284
      %p291 = scmp.eq.s32.totalorder %s29, 3
      %p292 = por %p290, %p291
      %p293 = scmp.ne.s32.totalorder %s285, %s288
      %p294 = scmp.eq.s32.totalorder %s29, 0
      %p295 = por %p293, %p294
      %p296 = scmp.ne.s32.totalorder %s285, %s288
      %p297 = scmp.eq.s32.totalorder %s34, 3
      %p298 = por %p296, %p297
      %p299 = scmp.ne.s32.totalorder %s288, %s289
      %p300 = scmp.eq.s32.totalorder %s34, 0
      %p301 = por %p299, %p300
      %p302 = scmp.ne.s32.totalorder %s288, %s289
      %p303 = scmp.eq.s32.totalorder %s35, 3
      %p304 = por %p302, %p303
      %p306 = scmp.ne.s32.totalorder %s289, %s305
      %p307 = scmp.eq.s32.totalorder %s35, 0
      %p308 = por %p306, %p307
      %s309 = ssub.s32 %s37, %s44
      %p310 = scmp.eq.s32.totalorder %s309, 0
      %s312 = sadd.s32 %s311, 1
      %s313 = scalar_select %p310, %s311, %s312
      %p316 = pneg %p310
      %p317 = scmp.eq.s32.totalorder %s29, 3
      %p318 = por %p316, %p317
      %p319 = scmp.ne.s32.totalorder %s311, %s314
      %p320 = scmp.eq.s32.totalorder %s29, 0
      %p321 = por %p319, %p320
      %p322 = scmp.ne.s32.totalorder %s311, %s314
      %p323 = scmp.eq.s32.totalorder %s34, 3
      %p324 = por %p322, %p323
      %p325 = scmp.ne.s32.totalorder %s314, %s315
      %p326 = scmp.eq.s32.totalorder %s34, 0
      %p327 = por %p325, %p326
      %p328 = scmp.ne.s32.totalorder %s314, %s315
      %p329 = scmp.eq.s32.totalorder %s35, 3
      %p330 = por %p328, %p329
      %p332 = scmp.ne.s32.totalorder %s315, %s331
      %p333 = scmp.eq.s32.totalorder %s35, 0
      %p334 = por %p332, %p333
      %s335 = ssub.s32 %s37, %s44
      %p336 = scmp.eq.s32.totalorder %s335, 0
      %s338 = sadd.s32 %s337, 1
      %s339 = scalar_select %p336, %s337, %s338
      %p342 = pneg %p336
      %p343 = scmp.eq.s32.totalorder %s29, 3
      %p344 = por %p342, %p343
      %p345 = scmp.ne.s32.totalorder %s337, %s340
      %p346 = scmp.eq.s32.totalorder %s29, 0
      %p347 = por %p345, %p346
      %p348 = scmp.ne.s32.totalorder %s337, %s340
      %p349 = scmp.eq.s32.totalorder %s34, 3
      %p350 = por %p348, %p349
      %p351 = scmp.ne.s32.totalorder %s340, %s341
      %p352 = scmp.eq.s32.totalorder %s34, 0
      %p353 = por %p351, %p352
      %p354 = scmp.ne.s32.totalorder %s340, %s341
      %p355 = scmp.eq.s32.totalorder %s35, 3
      %p356 = por %p354, %p355
      %p358 = scmp.ne.s32.totalorder %s341, %s357
      %p359 = scmp.eq.s32.totalorder %s35, 0
      %p360 = por %p358, %p359
      %s362 = sadd.s32 %s361, 1
      %p365 = scmp.eq.s32.totalorder %s29, 3
      %p366 = scmp.ne.s32.totalorder %s361, %s363
      %p367 = scmp.eq.s32.totalorder %s29, 0
      %p368 = por %p366, %p367
      %p369 = scmp.ne.s32.totalorder %s361, %s363
      %p370 = scmp.eq.s32.totalorder %s34, 3
      %p371 = por %p369, %p370
      %p372 = scmp.ne.s32.totalorder %s363, %s364
      %p373 = scmp.eq.s32.totalorder %s34, 0
      %p374 = por %p372, %p373
      %p375 = scmp.ne.s32.totalorder %s363, %s364
      %p376 = scmp.eq.s32.totalorder %s35, 3
      %p377 = por %p375, %p376
      %p379 = scmp.ne.s32.totalorder %s364, %s378
      %p380 = scmp.eq.s32.totalorder %s35, 0
      %p381 = por %p379, %p380
      %s383 = sadd.s32 %s382, 1
      %p386 = scmp.eq.s32.totalorder %s29, 3
      %p387 = scmp.ne.s32.totalorder %s382, %s384
      %p388 = scmp.eq.s32.totalorder %s29, 0
      %p389 = por %p387, %p388
      %p390 = scmp.ne.s32.totalorder %s382, %s384
      %p391 = scmp.eq.s32.totalorder %s34, 3
      %p392 = por %p390, %p391
      %p393 = scmp.ne.s32.totalorder %s384, %s385
      %p394 = scmp.eq.s32.totalorder %s34, 0
      %p395 = por %p393, %p394
      %p396 = scmp.ne.s32.totalorder %s384, %s385
      %p397 = scmp.eq.s32.totalorder %s35, 3
      %p398 = por %p396, %p397
      %p400 = scmp.ne.s32.totalorder %s385, %s399
      %p401 = scmp.eq.s32.totalorder %s35, 0
      %p402 = por %p400, %p401
      %s403 = ssub.s32 %s36, %s48
      %p404 = scmp.eq.s32.totalorder %s403, 0
      %s406 = sadd.s32 %s405, 1
      %s407 = scalar_select %p404, %s405, %s406
      %p410 = pneg %p404
      %p411 = scmp.eq.s32.totalorder %s29, 3
      %p412 = por %p410, %p411
      %p413 = scmp.ne.s32.totalorder %s405, %s408
      %p414 = scmp.eq.s32.totalorder %s29, 0
      %p415 = por %p413, %p414
      %p416 = scmp.ne.s32.totalorder %s405, %s408
      %p417 = scmp.eq.s32.totalorder %s34, 3
      %p418 = por %p416, %p417
      %p419 = scmp.ne.s32.totalorder %s408, %s409
      %p420 = scmp.eq.s32.totalorder %s34, 0
      %p421 = por %p419, %p420
      %p422 = scmp.ne.s32.totalorder %s408, %s409
      %p423 = scmp.eq.s32.totalorder %s35, 3
      %p424 = por %p422, %p423
      %p426 = scmp.ne.s32.totalorder %s409, %s425
      %p427 = scmp.eq.s32.totalorder %s35, 0
      %p428 = por %p426, %p427
      %p429 = scmp.le.s32.totalorder 1, %s29
      %p430 = scmp.lt.s32.totalorder %s29, 5
      %p431 = pnand %p429, %p430
      %p432 = pneg %p431
      // Predicated region
      $region9: #{tpu_custom_call.1} parent=5 // pred_check
        _
      $region10: #{tpu_custom_call.1} parent=5 // pred_check_branch
        %434 = sbr.rel (%p431) target = $region12
      $region11: #{tpu_custom_call.1} parent=5 // pred_region
        %s435 = ssub.s32 %s29, 1
        // Predicated region
        $region13: #{tpu_custom_call.1} parent=11 // pred_check
          %p436 = pneg %p374
        $region14: #{tpu_custom_call.1} parent=11 // pred_check_branch
          %438 = sbr.rel (%p436) target = $region16
        $region15: #{tpu_custom_call.1} parent=11 // pred_region
          _
        $region16: #{tpu_custom_call.1} parent=11 // pred_fallthru
          _
        // Predicated region
        $region17: #{tpu_custom_call.1} parent=11 // pred_check
          %p439 = pneg %p395
        $region18: #{tpu_custom_call.1} parent=11 // pred_check_branch
          %441 = sbr.rel (%p439) target = $region20
        $region19: #{tpu_custom_call.1} parent=11 // pred_region
          _
        $region20: #{tpu_custom_call.1} parent=11 // pred_fallthru
          _
      $region12: #{tpu_custom_call.1} parent=5 // pred_fallthru
        _
      %p442 = scmp.lt.s32.totalorder %s29, 4
      // Predicated region
      $region21: #{tpu_custom_call.1} parent=5 // pred_check
        %p443 = pneg %p442
      $region22: #{tpu_custom_call.1} parent=5 // pred_check_branch
        %445 = sbr.rel (%p443) target = $region24
      $region23: #{tpu_custom_call.1} parent=5 // pred_region
        // Predicated region
        $region25: #{tpu_custom_call.1} parent=23 // pred_check
          %p446 = pneg %p61
        $region26: #{tpu_custom_call.1} parent=23 // pred_check_branch
          %448 = sbr.rel (%p446) target = $region28
        $region27: #{tpu_custom_call.1} parent=23 // pred_region
          %s449 = sand.u32 %s51, 1
          %s450 = scalar_lea.sflag [#allocation4], %s449
          %s451 = sand.u32 %s51, 1
          %s452 = smul.addr %s451, 8
          %s453 = scalar_lea.vmem [#allocation3], %s452
          %s455 = ssub.s32 128, 128
          %456 = vsyncadd %s450, %s455
          %s457 = smul.addr %s36, 128
          %s458 = scalar_lea.hbm %s0, %s457
          %s460 = sshll.u32 %s453, 4
          %s461 = int_to_ptr.vmem [resolvable:$true] %s460
          %463 = dma.hbm_to_vmem [thread:$0]  %s458, 128, %s461, %s450
        $region28: #{tpu_custom_call.1} parent=23 // pred_fallthru
          _
        // Predicated region
        $region29: #{tpu_custom_call.1} parent=23 // pred_check
          %p464 = pneg %p87
        $region30: #{tpu_custom_call.1} parent=23 // pred_check_branch
          %466 = sbr.rel (%p464) target = $region32
        $region31: #{tpu_custom_call.1} parent=23 // pred_region
          %s467 = sand.u32 %s77, 1
          %s468 = scalar_lea.sflag [#allocation7], %s467
          %s469 = sand.u32 %s77, 1
          %s470 = scalar_lea.vmem [#allocation6], %s469
          %s472 = ssub.s32 16, 16
          %473 = vsyncadd %s468, %s472
          %s474 = smul.addr %s37, 16
          %s475 = scalar_lea.hbm %s1, %s474
          %s477 = sshll.u32 %s470, 4
          %s478 = int_to_ptr.vmem [resolvable:$true] %s477
          %480 = dma.hbm_to_vmem [thread:$0]  %s475, 16, %s478, %s468
        $region32: #{tpu_custom_call.1} parent=23 // pred_fallthru
          _
        // Predicated region
        $region33: #{tpu_custom_call.1} parent=23 // pred_check
          %p481 = pneg %p113
        $region34: #{tpu_custom_call.1} parent=23 // pred_check_branch
          %483 = sbr.rel (%p481) target = $region36
        $region35: #{tpu_custom_call.1} parent=23 // pred_region
          %p484 = scmp.lt.s32.totalorder %s37, 1
          %s485 = scalar_select %p484, %s37, 1
          %s486 = scalar_lea.vmem %s2, %s485
        $region36: #{tpu_custom_call.1} parent=23 // pred_fallthru
          _
        // Predicated region
        $region37: #{tpu_custom_call.1} parent=23 // pred_check
          %p487 = pneg %p139
        $region38: #{tpu_custom_call.1} parent=23 // pred_check_branch
          %489 = sbr.rel (%p487) target = $region40
        $region39: #{tpu_custom_call.1} parent=23 // pred_region
          %p490 = scmp.lt.s32.totalorder %s37, 1
          %s491 = scalar_select %p490, %s37, 1
          %s492 = smul.addr %s491, 4
          %s493 = smul.addr %s492, 4
          %s494 = scalar_lea.vmem %s3, %s493
        $region40: #{tpu_custom_call.1} parent=23 // pred_fallthru
          _
        // Predicated region
        $region41: #{tpu_custom_call.1} parent=23 // pred_check
          %p495 = pneg %p165
        $region42: #{tpu_custom_call.1} parent=23 // pred_check_branch
          %497 = sbr.rel (%p495) target = $region44
        $region43: #{tpu_custom_call.1} parent=23 // pred_region
          %p498 = scmp.lt.s32.totalorder %s37, 1
          %s499 = scalar_select %p498, %s37, 1
          %s500 = smul.addr %s499, 4
          %s501 = smul.addr %s500, 4
          %s502 = scalar_lea.vmem %s4, %s501
        $region44: #{tpu_custom_call.1} parent=23 // pred_fallthru
          _
        // Predicated region
        $region45: #{tpu_custom_call.1} parent=23 // pred_check
          %p503 = pneg %p191
        $region46: #{tpu_custom_call.1} parent=23 // pred_check_branch
          %505 = sbr.rel (%p503) target = $region48
        $region47: #{tpu_custom_call.1} parent=23 // pred_region
          %p506 = scmp.lt.s32.totalorder %s37, 1
          %s507 = scalar_select %p506, %s37, 1
          %s508 = scalar_lea.vmem %s5, %s507
        $region48: #{tpu_custom_call.1} parent=23 // pred_fallthru
          _
        // Predicated region
        $region49: #{tpu_custom_call.1} parent=23 // pred_check
          %p509 = pneg %p217
        $region50: #{tpu_custom_call.1} parent=23 // pred_check_branch
          %511 = sbr.rel (%p509) target = $region52
        $region51: #{tpu_custom_call.1} parent=23 // pred_region
          %p512 = scmp.lt.s32.totalorder %s37, 1
          %s513 = scalar_select %p512, %s37, 1
          %s514 = scalar_lea.vmem %s6, %s513
        $region52: #{tpu_custom_call.1} parent=23 // pred_fallthru
          _
        // Predicated region
        $region53: #{tpu_custom_call.1} parent=23 // pred_check
          %p515 = pneg %p243
        $region54: #{tpu_custom_call.1} parent=23 // pred_check_branch
          %517 = sbr.rel (%p515) target = $region56
        $region55: #{tpu_custom_call.1} parent=23 // pred_region
          %p518 = scmp.lt.s32.totalorder %s37, 1
          %s519 = scalar_select %p518, %s37, 1
          %s520 = scalar_lea.vmem %s7, %s519
        $region56: #{tpu_custom_call.1} parent=23 // pred_fallthru
          _
        // Predicated region
        $region57: #{tpu_custom_call.1} parent=23 // pred_check
          %p521 = pneg %p269
        $region58: #{tpu_custom_call.1} parent=23 // pred_check_branch
          %523 = sbr.rel (%p521) target = $region60
        $region59: #{tpu_custom_call.1} parent=23 // pred_region
          %p524 = scmp.lt.s32.totalorder %s37, 1
          %s525 = scalar_select %p524, %s37, 1
          %s526 = smul.addr %s525, 4
          %s527 = smul.addr %s526, 4
          %s528 = scalar_lea.vmem %s8, %s527
        $region60: #{tpu_custom_call.1} parent=23 // pred_fallthru
          _
        // Predicated region
        $region61: #{tpu_custom_call.1} parent=23 // pred_check
          %p529 = pneg %p295
        $region62: #{tpu_custom_call.1} parent=23 // pred_check_branch
          %531 = sbr.rel (%p529) target = $region64
        $region63: #{tpu_custom_call.1} parent=23 // pred_region
          %p532 = scmp.lt.s32.totalorder %s37, 1
          %s533 = scalar_select %p532, %s37, 1
          %s534 = scalar_lea.vmem %s9, %s533
        $region64: #{tpu_custom_call.1} parent=23 // pred_fallthru
          _
        // Predicated region
        $region65: #{tpu_custom_call.1} parent=23 // pred_check
          %p535 = pneg %p321
        $region66: #{tpu_custom_call.1} parent=23 // pred_check_branch
          %537 = sbr.rel (%p535) target = $region68
        $region67: #{tpu_custom_call.1} parent=23 // pred_region
          %p538 = scmp.lt.s32.totalorder %s37, 1
          %s539 = scalar_select %p538, %s37, 1
          %s540 = smul.addr %s539, 8
          %s541 = smul.addr %s540, 4
          %s542 = scalar_lea.vmem %s10, %s541
        $region68: #{tpu_custom_call.1} parent=23 // pred_fallthru
          _
        // Predicated region
        $region69: #{tpu_custom_call.1} parent=23 // pred_check
          %p543 = pneg %p347
        $region70: #{tpu_custom_call.1} parent=23 // pred_check_branch
          %545 = sbr.rel (%p543) target = $region72
        $region71: #{tpu_custom_call.1} parent=23 // pred_region
          %p546 = scmp.lt.s32.totalorder %s37, 1
          %s547 = scalar_select %p546, %s37, 1
          %s548 = scalar_lea.vmem %s11, %s547
        $region72: #{tpu_custom_call.1} parent=23 // pred_fallthru
          _
      $region24: #{tpu_custom_call.1} parent=5 // pred_fallthru
        _
      %p549 = scmp.le.s32.totalorder 1, %s29
      %p550 = scmp.lt.s32.totalorder %s29, 5
      %p551 = pnand %p549, %p550
      %p552 = pneg %p551
      // Predicated region
      $region73: #{tpu_custom_call.1} parent=5 // pred_check
        _
      $region74: #{tpu_custom_call.1} parent=5 // pred_check_branch
        %554 = sbr.rel (%p551) target = $region76
      $region75: #{tpu_custom_call.1} parent=5 // pred_region
        %s555 = ssub.s32 %s29, 1
        %s556 = sand.u32 %s54, 1
        %s557 = scalar_lea.sflag [#allocation4], %s556
        %s558 = sand.u32 %s54, 1
        %s559 = smul.addr %s558, 8
        %s560 = scalar_lea.vmem [#allocation3], %s559
        // Predicated region
        $region77: #{tpu_custom_call.1} parent=75 // pred_check
          %p561 = pneg %p67
        $region78: #{tpu_custom_call.1} parent=75 // pred_check_branch
          %563 = sbr.rel (%p561) target = $region80
        $region79: #{tpu_custom_call.1} parent=75 // pred_region
          %564 = dma.done %s557, 128
        $region80: #{tpu_custom_call.1} parent=75 // pred_fallthru
          _
        %s565 = sand.u32 %s80, 1
        %s566 = scalar_lea.sflag [#allocation7], %s565
        %s567 = sand.u32 %s80, 1
        %s568 = scalar_lea.vmem [#allocation6], %s567
        // Predicated region
        $region81: #{tpu_custom_call.1} parent=75 // pred_check
          %p569 = pneg %p93
        $region82: #{tpu_custom_call.1} parent=75 // pred_check_branch
          %571 = sbr.rel (%p569) target = $region84
        $region83: #{tpu_custom_call.1} parent=75 // pred_region
          %572 = dma.done %s566, 16
        $region84: #{tpu_custom_call.1} parent=75 // pred_fallthru
          _
        %s573 = sand.u32 %s54, 1
        %s574 = scalar_lea.sflag [#allocation4], %s573
        %s575 = sand.u32 %s54, 1
        %s576 = smul.addr %s575, 8
        %s577 = scalar_lea.vmem [#allocation3], %s576
        %p578 = pneg %p67
        %p579 = pneg %p64
        %s580 = sand.u32 %s80, 1
        %s581 = scalar_lea.sflag [#allocation7], %s580
        %s582 = sand.u32 %s80, 1
        %s583 = scalar_lea.vmem [#allocation6], %s582
        %p584 = pneg %p93
        %p585 = pneg %p90
        %p586 = scmp.lt.s32.totalorder %s39, 1
        %s587 = scalar_select %p586, %s39, 1
        %s588 = scalar_lea.vmem %s2, %s587
        %p589 = pneg %p119
        %p590 = pneg %p116
        %p591 = scmp.lt.s32.totalorder %s39, 1
        %s592 = scalar_select %p591, %s39, 1
        %s593 = smul.addr %s592, 4
        %s594 = smul.addr %s593, 4
        %s595 = scalar_lea.vmem %s3, %s594
        %p596 = pneg %p145
        %p597 = pneg %p142
        %p598 = scmp.lt.s32.totalorder %s39, 1
        %s599 = scalar_select %p598, %s39, 1
        %s600 = smul.addr %s599, 4
        %s601 = smul.addr %s600, 4
        %s602 = scalar_lea.vmem %s4, %s601
        %p603 = pneg %p171
        %p604 = pneg %p168
        %p605 = scmp.lt.s32.totalorder %s39, 1
        %s606 = scalar_select %p605, %s39, 1
        %s607 = scalar_lea.vmem %s5, %s606
        %p608 = pneg %p197
        %p609 = pneg %p194
        %p610 = scmp.lt.s32.totalorder %s39, 1
        %s611 = scalar_select %p610, %s39, 1
        %s612 = scalar_lea.vmem %s6, %s611
        %p613 = pneg %p223
        %p614 = pneg %p220
        %p615 = scmp.lt.s32.totalorder %s39, 1
        %s616 = scalar_select %p615, %s39, 1
        %s617 = scalar_lea.vmem %s7, %s616
        %p618 = pneg %p249
        %p619 = pneg %p246
        %p620 = scmp.lt.s32.totalorder %s39, 1
        %s621 = scalar_select %p620, %s39, 1
        %s622 = smul.addr %s621, 4
        %s623 = smul.addr %s622, 4
        %s624 = scalar_lea.vmem %s8, %s623
        %p625 = pneg %p275
        %p626 = pneg %p272
        %p627 = scmp.lt.s32.totalorder %s39, 1
        %s628 = scalar_select %p627, %s39, 1
        %s629 = scalar_lea.vmem %s9, %s628
        %p630 = pneg %p301
        %p631 = pneg %p298
        %p632 = scmp.lt.s32.totalorder %s39, 1
        %s633 = scalar_select %p632, %s39, 1
        %s634 = smul.addr %s633, 8
        %s635 = smul.addr %s634, 4
        %s636 = scalar_lea.vmem %s10, %s635
        %p637 = pneg %p327
        %p638 = pneg %p324
        %p639 = scmp.lt.s32.totalorder %s39, 1
        %s640 = scalar_select %p639, %s39, 1
        %s641 = scalar_lea.vmem %s11, %s640
        %p642 = pneg %p353
        %p643 = pneg %p350
        %p644 = pneg %p374
        %p645 = pneg %p371
        %p646 = pneg %p395
        %p647 = pneg %p392
        %p648 = pneg %p421
        %p649 = pneg %p418
        %s650 = sand.u32 %s408, 1
        %s651 = scalar_lea.sflag [#allocation5], %s650
        %s652 = sand.u32 %s408, 1
        %s653 = smul.addr %s652, 8
        %s654 = scalar_lea.vmem [#allocation8], %s653
        %p655 = scmp.lt.s32.totalorder %s39, 1
        %s656 = scalar_select %p655, %s39, 1
        %s657 = scalar_lea.vmem %s2, %s656
        %p658 = scmp.lt.s32.totalorder %s39, 1
        %s659 = scalar_select %p658, %s39, 1
        %s660 = smul.addr %s659, 4
        %s661 = smul.addr %s660, 4
        %s662 = scalar_lea.vmem %s3, %s661
        %p663 = scmp.lt.s32.totalorder %s39, 1
        %s664 = scalar_select %p663, %s39, 1
        %s665 = smul.addr %s664, 4
        %s666 = smul.addr %s665, 4
        %s667 = scalar_lea.vmem %s4, %s666
        %p668 = scmp.lt.s32.totalorder %s39, 1
        %s669 = scalar_select %p668, %s39, 1
        %s670 = scalar_lea.vmem %s5, %s669
        %p671 = scmp.lt.s32.totalorder %s39, 1
        %s672 = scalar_select %p671, %s39, 1
        %s673 = scalar_lea.vmem %s6, %s672
        %p674 = scmp.lt.s32.totalorder %s39, 1
        %s675 = scalar_select %p674, %s39, 1
        %s676 = scalar_lea.vmem %s7, %s675
        %p677 = scmp.lt.s32.totalorder %s39, 1
        %s678 = scalar_select %p677, %s39, 1
        %s679 = smul.addr %s678, 4
        %s680 = smul.addr %s679, 4
        %s681 = scalar_lea.vmem %s8, %s680
        %p682 = scmp.lt.s32.totalorder %s39, 1
        %s683 = scalar_select %p682, %s39, 1
        %s684 = scalar_lea.vmem %s9, %s683
        %p685 = scmp.lt.s32.totalorder %s39, 1
        %s686 = scalar_select %p685, %s39, 1
        %s687 = smul.addr %s686, 8
        %s688 = smul.addr %s687, 4
        %s689 = scalar_lea.vmem %s10, %s688
        %p690 = scmp.lt.s32.totalorder %s39, 1
        %s691 = scalar_select %p690, %s39, 1
        %s692 = scalar_lea.vmem %s11, %s691
        %p694 = scmp.eq.s32.totalorder %s39, 0
        // Predicated region
        $region85: #{tpu_custom_call.1} parent=75 // pred_check
          %p695 = pneg %p694
        $region86: #{tpu_custom_call.1} parent=75 // pred_check_branch
          %697 = sbr.rel (%p695) target = $region88
        $region87: #{tpu_custom_call.1} parent=75 // pred_region
          %v698 = vld [vmem:[%s560] sm:$0xff]
          %vm699 = vcmask 261120
          %700 = vst.msk [vmem:[#allocation2] sm:$0xff] %vm699, %v698
        $region88: #{tpu_custom_call.1} parent=75 // pred_fallthru
          _
        %v701 = vld [vmem:[#allocation2] sm:$0xff]
        %v702 = vld [vmem:[%s568] sm:$0x1]
        %v703 = vld [vmem:[%s657] sm:$0x1]
        %vm704 = vcmask 261120
        %v705 = vsel %vm704, %v701, 0.0
        %706 = vadd.xlane.f32.xlu0 %v705
        %v707 = vpop.xlane.xlu0 %706
        %v708 = vrcp.pop 32.0
        %v709 = vmul.f32 %v707, %v708
        %v710 = vsub.f32 %v701, %v709
        %v711 = vmul.f32 %v710, %v710
        %v712 = vsel %vm704, %v711, 0.0
        %713 = vadd.xlane.f32.xlu0 %v712
        %v714 = vpop.xlane.xlu0 %713
        %v715 = vmul.f32 %v714, %v708
        %v716 = vadd.f32 %v715, 1e-05
        %v717 = vrsqrt.pop %v716
        %v718 = vmul.f32 %v710, %v717
        %v720 = vlaneseq
        %v721 = vshrl.u32 %v720, 7
        %v722 = vsub.s32 0, %v721
        %v723 = vrot.slane %v702, %v722
        %v725 = vmul.f32 %v718, %v723
        %v727 = vlaneseq
        %v728 = vshrl.u32 %v727, 7
        %v729 = vsub.s32 0, %v728
        %v730 = vrot.slane %v703, %v729
        %v732 = vadd.f32 %v725, %v730
        %v733 = vpack.c.bf16 %v732, %v732
        %v734 = vld [vmem:[%s662] sm:$0xf]
        %v735 = vld [vmem:[%s662 + $0x4] sm:$0xf]
        %v736 = vld [vmem:[%s662 + $0x8] sm:$0xf]
        %v737 = vld [vmem:[%s662 + $0xc] sm:$0xf]
        %v742 = vunpack.c.l.b16 %v734
        %v743 = vunpack.c.l.b16 %v735
        %v744 = vunpack.c.l.b16 %v736
        %v745 = vunpack.c.l.b16 %v737
        %v746 = vpack.c.b16 %v743, %v742
        %v747 = vpack.c.b16 %v745, %v744
        %v751 = vsel %vm704, %v733, 0
        %753 = vmatprep.subr.bf16.mxu0 0
        %754 = vmatpush1.bf16.msra.mxu0 0
        %755 = vmatprep.subr.bf16.mxu0 0
        %756 = vmatpush1.bf16.msra.mxu0 0
        %757 = vmatprep.subr.bf16.mxu0 0
        %758 = vmatpush1.bf16.msra.mxu0 0
        %759 = vmatprep.subr.bf16.mxu0 0
        %760 = vmatpush1.bf16.msra.mxu0 0
        %761 = vmatprep.subr.bf16.mxu0 0
        %762 = vmatpush1.bf16.msra.mxu0 0
        %763 = vmatprep.subr.bf16.mxu0 0
        %764 = vmatpush1.bf16.msra.mxu0 0
        %765 = vmatprep.subr.bf16.mxu0 0
        %766 = vmatpush1.bf16.msra.mxu0 %v747
        %767 = vmatprep.subr.bf16.mxu0 0
        %768 = vmatpush1.bf16.msra.mxu0 %v746
        %769 = vmatprep.subr.bf16.mxu0 0
        %770 = vmatpush2.bf16.msra.mxu0 0
        %771 = vmatprep.subr.bf16.mxu0 0
        %772 = vmatpush2.bf16.msra.mxu0 0
        %773 = vmatprep.subr.bf16.mxu0 0
        %774 = vmatpush2.bf16.msra.mxu0 0
        %775 = vmatprep.subr.bf16.mxu0 0
        %776 = vmatpush2.bf16.msra.mxu0 0
        %777 = vmatprep.subr.bf16.mxu0 0
        %778 = vmatpush2.bf16.msra.mxu0 0
        %779 = vmatprep.subr.bf16.mxu0 0
        %780 = vmatpush2.bf16.msra.mxu0 0
        %781 = vmatprep.subr.bf16.mxu0 0
        %782 = vmatpush2.bf16.msra.mxu0 0
        %783 = vmatprep.subr.bf16.mxu0 0
        %784 = vmatpush2.bf16.msra.mxu0 0
        %785 = vmatprep.mubr.bf16.mxu0 0
        %786 = vmatmul.mubr.bf16.gmra.mxu0 %v751
        %v787 = vpop.f32.mrf.mxu0
        %v788 = vadd.f32 0.0, %v787
        %v789 = vpop.f32.mrf.mxu0
        %v790 = vpop.f32.mrf.mxu0
        %v791 = vpop.f32.mrf.mxu0
        %792 = vdwg.mxu0
        %794 = vrot.lane.b32.xlu0 %v788, 96
        %v795 = vpop.permute.xlu0 %794
        %vm796 = vcmask 64512
        %v797 = vsel %vm796, %v788, 0
        %v799 = vsel %vm796, %v795, 0
        %801 = vmatprep.subr.mxu0 0.0
        %802 = vmatpush1.xpose.msra.mxu0 0.0
        %803 = vmatprep.subr.mxu0 0.0
        %804 = vmatpush1.xpose.msra.mxu0 0.0
        %805 = vmatprep.subr.mxu0 0.0
        %806 = vmatpush1.xpose.msra.mxu0 0.0
        %807 = vmatprep.subr.mxu0 0.0
        %808 = vmatpush1.xpose.msra.mxu0 0.0
        %809 = vmatprep.subr.mxu0 0.0
        %810 = vmatpush1.xpose.msra.mxu0 0.0
        %811 = vmatprep.subr.mxu0 0.0
        %812 = vmatpush1.xpose.msra.mxu0 0.0
        %813 = vmatprep.subr.mxu0 0.0
        %814 = vmatpush1.xpose.msra.mxu0 0.0
        %815 = vmatprep.subr.mxu0 0.0
        %816 = vmatpush1.xpose.msra.mxu0 0.0
        %817 = vmatprep.subr.mxu0 0.0
        %818 = vmatpush1.xpose.msra.mxu0 0.0
        %819 = vmatprep.subr.mxu0 0.0
        %820 = vmatpush1.xpose.msra.mxu0 0.0
        %821 = vmatprep.subr.mxu0 0.0
        %822 = vmatpush1.xpose.msra.mxu0 0.0
        %823 = vmatprep.subr.mxu0 0.0
        %824 = vmatpush1.xpose.msra.mxu0 0.0
        %825 = vmatprep.subr.mxu0 0.0
        %826 = vmatpush1.xpose.msra.mxu0 0.0
        %827 = vmatprep.subr.mxu0 0.0
        %828 = vmatpush1.xpose.msra.mxu0 0.0
        %829 = vmatprep.subr.mxu0 0.0
        %830 = vmatpush1.xpose.msra.mxu0 0.0
        %831 = vmatprep.subr.mxu0 0.0
        %832 = vmatpush1.xpose.msra.mxu0 %v799
        %833 = vmatprep.subr.mxu0 0.0
        %834 = vmatpush2.xpose.msra.mxu0 0.0
        %835 = vmatprep.subr.mxu0 0.0
        %836 = vmatpush2.xpose.msra.mxu0 0.0
        %837 = vmatprep.subr.mxu0 0.0
        %838 = vmatpush2.xpose.msra.mxu0 0.0
        %839 = vmatprep.subr.mxu0 0.0
        %840 = vmatpush2.xpose.msra.mxu0 0.0
        %841 = vmatprep.subr.mxu0 0.0
        %842 = vmatpush2.xpose.msra.mxu0 0.0
        %843 = vmatprep.subr.mxu0 0.0
        %844 = vmatpush2.xpose.msra.mxu0 0.0
        %845 = vmatprep.subr.mxu0 0.0
        %846 = vmatpush2.xpose.msra.mxu0 0.0
        %847 = vmatprep.subr.mxu0 0.0
        %848 = vmatpush2.xpose.msra.mxu0 0.0
        %849 = vmatprep.subr.mxu0 0.0
        %850 = vmatpush2.xpose.msra.mxu0 0.0
        %851 = vmatprep.subr.mxu0 0.0
        %852 = vmatpush2.xpose.msra.mxu0 0.0
        %853 = vmatprep.subr.mxu0 0.0
        %854 = vmatpush2.xpose.msra.mxu0 0.0
        %855 = vmatprep.subr.mxu0 0.0
        %856 = vmatpush2.xpose.msra.mxu0 0.0
        %857 = vmatprep.subr.mxu0 0.0
        %858 = vmatpush2.xpose.msra.mxu0 0.0
        %859 = vmatprep.subr.mxu0 0.0
        %860 = vmatpush2.xpose.msra.mxu0 0.0
        %861 = vmatprep.subr.mxu0 0.0
        %862 = vmatpush2.xpose.msra.mxu0 0.0
        %863 = vmatprep.subr.mxu0 0.0
        %864 = vmatpush2.xpose.msra.mxu0 0.0
        %865 = vmatprep.mubr.f32.mxu0 0.0
        %866 = vmatmul.mubr.f32.gmra.mxu0 %v797
        %v867 = vpop.f32.mrf.mxu0
        %v868 = vadd.f32 0.0, %v867
        %v869 = vpop.f32.mrf.mxu0
        %870 = vdwg.mxu0
        %v871 = vsel %vm796, %v868, -inf
        %872 = vmax.xlane.f32.xlu0 %v871
        %v873 = vpop.xlane.xlu0 %872
        %v874 = vsub.f32 %v868, %v873
        %v875 = vmul.f32 %v874, 1.442695
        %v876 = vpow.pop %v875
        %v877 = vsel %vm796, %v876, 0.0
        %878 = vadd.xlane.f32.xlu0 %v877
        %v879 = vpop.xlane.xlu0 %878
        %v880 = vrcp.pop %v879
        %v881 = vmul.f32 %v876, %v880
        %882 = vrot.lane.b32.xlu0 %v788, 64
        %v883 = vpop.permute.xlu0 %882
        %v886 = vsel %vm796, %v881, 0
        %888 = vmatprep.subr.mxu0 0.0
        %889 = vmatpush1.msra.mxu0 0.0
        %890 = vmatprep.subr.mxu0 0.0
        %891 = vmatpush1.msra.mxu0 0.0
        %892 = vmatprep.subr.mxu0 0.0
        %893 = vmatpush1.msra.mxu0 0.0
        %894 = vmatprep.subr.mxu0 0.0
        %895 = vmatpush1.msra.mxu0 0.0
        %896 = vmatprep.subr.mxu0 0.0
        %897 = vmatpush1.msra.mxu0 0.0
        %898 = vmatprep.subr.mxu0 0.0
        %899 = vmatpush1.msra.mxu0 0.0
        %900 = vmatprep.subr.mxu0 0.0
        %901 = vmatpush1.msra.mxu0 0.0
        %902 = vmatprep.subr.mxu0 0.0
        %903 = vmatpush1.msra.mxu0 0.0
        %904 = vmatprep.subr.mxu0 0.0
        %905 = vmatpush1.msra.mxu0 0.0
        %906 = vmatprep.subr.mxu0 0.0
        %907 = vmatpush1.msra.mxu0 0.0
        %908 = vmatprep.subr.mxu0 0.0
        %909 = vmatpush1.msra.mxu0 0.0
        %910 = vmatprep.subr.mxu0 0.0
        %911 = vmatpush1.msra.mxu0 0.0
        %912 = vmatprep.subr.mxu0 0.0
        %913 = vmatpush1.msra.mxu0 0.0
        %914 = vmatprep.subr.mxu0 0.0
        %915 = vmatpush1.msra.mxu0 0.0
        %916 = vmatprep.subr.mxu0 0.0
        %917 = vmatpush1.msra.mxu0 0.0
        %918 = vmatprep.subr.mxu0 0.0
        %919 = vmatpush1.msra.mxu0 %v883
        %920 = vmatprep.subr.mxu0 0.0
        %921 = vmatpush2.msra.mxu0 0.0
        %922 = vmatprep.subr.mxu0 0.0
        %923 = vmatpush2.msra.mxu0 0.0
        %924 = vmatprep.subr.mxu0 0.0
        %925 = vmatpush2.msra.mxu0 0.0
        %926 = vmatprep.subr.mxu0 0.0
        %927 = vmatpush2.msra.mxu0 0.0
        %928 = vmatprep.subr.mxu0 0.0
        %929 = vmatpush2.msra.mxu0 0.0
        %930 = vmatprep.subr.mxu0 0.0
        %931 = vmatpush2.msra.mxu0 0.0
        %932 = vmatprep.subr.mxu0 0.0
        %933 = vmatpush2.msra.mxu0 0.0
        %934 = vmatprep.subr.mxu0 0.0
        %935 = vmatpush2.msra.mxu0 0.0
        %936 = vmatprep.subr.mxu0 0.0
        %937 = vmatpush2.msra.mxu0 0.0
        %938 = vmatprep.subr.mxu0 0.0
        %939 = vmatpush2.msra.mxu0 0.0
        %940 = vmatprep.subr.mxu0 0.0
        %941 = vmatpush2.msra.mxu0 0.0
        %942 = vmatprep.subr.mxu0 0.0
        %943 = vmatpush2.msra.mxu0 0.0
        %944 = vmatprep.subr.mxu0 0.0
        %945 = vmatpush2.msra.mxu0 0.0
        %946 = vmatprep.subr.mxu0 0.0
        %947 = vmatpush2.msra.mxu0 0.0
        %948 = vmatprep.subr.mxu0 0.0
        %949 = vmatpush2.msra.mxu0 0.0
        %950 = vmatprep.subr.mxu0 0.0
        %951 = vmatpush2.msra.mxu0 0.0
        %952 = vmatprep.mubr.f32.mxu0 0.0
        %953 = vmatmul.mubr.f32.gmra.mxu0 %v886
        %v954 = vpop.f32.mrf.mxu0
        %v955 = vadd.f32 0.0, %v954
        %v956 = vpop.f32.mrf.mxu0
        %957 = vdwg.mxu0
        %958 = vrot.lane.b32.xlu0 %v788, 120
        %v959 = vpop.permute.xlu0 %958
        %960 = vrot.lane.b32.xlu0 %v788, 88
        %v961 = vpop.permute.xlu0 %960
        %v962 = vsel %vm796, %v959, 0
        %v964 = vsel %vm796, %v961, 0
        %966 = vmatprep.subr.mxu0 0.0
        %967 = vmatpush1.xpose.msra.mxu0 0.0
        %968 = vmatprep.subr.mxu0 0.0
        %969 = vmatpush1.xpose.msra.mxu0 0.0
        %970 = vmatprep.subr.mxu0 0.0
        %971 = vmatpush1.xpose.msra.mxu0 0.0
        %972 = vmatprep.subr.mxu0 0.0
        %973 = vmatpush1.xpose.msra.mxu0 0.0
        %974 = vmatprep.subr.mxu0 0.0
        %975 = vmatpush1.xpose.msra.mxu0 0.0
        %976 = vmatprep.subr.mxu0 0.0
        %977 = vmatpush1.xpose.msra.mxu0 0.0
        %978 = vmatprep.subr.mxu0 0.0
        %979 = vmatpush1.xpose.msra.mxu0 0.0
        %980 = vmatprep.subr.mxu0 0.0
        %981 = vmatpush1.xpose.msra.mxu0 0.0
        %982 = vmatprep.subr.mxu0 0.0
        %983 = vmatpush1.xpose.msra.mxu0 0.0
        %984 = vmatprep.subr.mxu0 0.0
        %985 = vmatpush1.xpose.msra.mxu0 0.0
        %986 = vmatprep.subr.mxu0 0.0
        %987 = vmatpush1.xpose.msra.mxu0 0.0
        %988 = vmatprep.subr.mxu0 0.0
        %989 = vmatpush1.xpose.msra.mxu0 0.0
        %990 = vmatprep.subr.mxu0 0.0
        %991 = vmatpush1.xpose.msra.mxu0 0.0
        %992 = vmatprep.subr.mxu0 0.0
        %993 = vmatpush1.xpose.msra.mxu0 0.0
        %994 = vmatprep.subr.mxu0 0.0
        %995 = vmatpush1.xpose.msra.mxu0 0.0
        %996 = vmatprep.subr.mxu0 0.0
        %997 = vmatpush1.xpose.msra.mxu0 %v964
        %998 = vmatprep.subr.mxu0 0.0
        %999 = vmatpush2.xpose.msra.mxu0 0.0
        %1000 = vmatprep.subr.mxu0 0.0
        %1001 = vmatpush2.xpose.msra.mxu0 0.0
        %1002 = vmatprep.subr.mxu0 0.0
        %1003 = vmatpush2.xpose.msra.mxu0 0.0
        %1004 = vmatprep.subr.mxu0 0.0
        %1005 = vmatpush2.xpose.msra.mxu0 0.0
        %1006 = vmatprep.subr.mxu0 0.0
        %1007 = vmatpush2.xpose.msra.mxu0 0.0
        %1008 = vmatprep.subr.mxu0 0.0
        %1009 = vmatpush2.xpose.msra.mxu0 0.0
        %1010 = vmatprep.subr.mxu0 0.0
        %1011 = vmatpush2.xpose.msra.mxu0 0.0
        %1012 = vmatprep.subr.mxu0 0.0
        %1013 = vmatpush2.xpose.msra.mxu0 0.0
        %1014 = vmatprep.subr.mxu0 0.0
        %1015 = vmatpush2.xpose.msra.mxu0 0.0
        %1016 = vmatprep.subr.mxu0 0.0
        %1017 = vmatpush2.xpose.msra.mxu0 0.0
        %1018 = vmatprep.subr.mxu0 0.0
        %1019 = vmatpush2.xpose.msra.mxu0 0.0
        %1020 = vmatprep.subr.mxu0 0.0
        %1021 = vmatpush2.xpose.msra.mxu0 0.0
        %1022 = vmatprep.subr.mxu0 0.0
        %1023 = vmatpush2.xpose.msra.mxu0 0.0
        %1024 = vmatprep.subr.mxu0 0.0
        %1025 = vmatpush2.xpose.msra.mxu0 0.0
        %1026 = vmatprep.subr.mxu0 0.0
        %1027 = vmatpush2.xpose.msra.mxu0 0.0
        %1028 = vmatprep.subr.mxu0 0.0
        %1029 = vmatpush2.xpose.msra.mxu0 0.0
        %1030 = vmatprep.mubr.f32.mxu0 0.0
        %1031 = vmatmul.mubr.f32.gmra.mxu0 %v962
        %v1032 = vpop.f32.mrf.mxu0
        %v1033 = vadd.f32 0.0, %v1032
        %v1034 = vpop.f32.mrf.mxu0
        %1035 = vdwg.mxu0
        %v1036 = vsel %vm796, %v1033, -inf
        %1037 = vmax.xlane.f32.xlu0 %v1036
        %v1038 = vpop.xlane.xlu0 %1037
        %v1039 = vsub.f32 %v1033, %v1038
        %v1040 = vmul.f32 %v1039, 1.442695
        %v1041 = vpow.pop %v1040
        %v1042 = vsel %vm796, %v1041, 0.0
        %1043 = vadd.xlane.f32.xlu0 %v1042
        %v1044 = vpop.xlane.xlu0 %1043
        %v1045 = vrcp.pop %v1044
        %v1046 = vmul.f32 %v1041, %v1045
        %1047 = vrot.lane.b32.xlu0 %v788, 56
        %v1048 = vpop.permute.xlu0 %1047
        %v1051 = vsel %vm796, %v1046, 0
        %1053 = vmatprep.subr.mxu0 0.0
        %1054 = vmatpush1.msra.mxu0 0.0
        %1055 = vmatprep.subr.mxu0 0.0
        %1056 = vmatpush1.msra.mxu0 0.0
        %1057 = vmatprep.subr.mxu0 0.0
        %1058 = vmatpush1.msra.mxu0 0.0
        %1059 = vmatprep.subr.mxu0 0.0
        %1060 = vmatpush1.msra.mxu0 0.0
        %1061 = vmatprep.subr.mxu0 0.0
        %1062 = vmatpush1.msra.mxu0 0.0
        %1063 = vmatprep.subr.mxu0 0.0
        %1064 = vmatpush1.msra.mxu0 0.0
        %1065 = vmatprep.subr.mxu0 0.0
        %1066 = vmatpush1.msra.mxu0 0.0
        %1067 = vmatprep.subr.mxu0 0.0
        %1068 = vmatpush1.msra.mxu0 0.0
        %1069 = vmatprep.subr.mxu0 0.0
        %1070 = vmatpush1.msra.mxu0 0.0
        %1071 = vmatprep.subr.mxu0 0.0
        %1072 = vmatpush1.msra.mxu0 0.0
        %1073 = vmatprep.subr.mxu0 0.0
        %1074 = vmatpush1.msra.mxu0 0.0
        %1075 = vmatprep.subr.mxu0 0.0
        %1076 = vmatpush1.msra.mxu0 0.0
        %1077 = vmatprep.subr.mxu0 0.0
        %1078 = vmatpush1.msra.mxu0 0.0
        %1079 = vmatprep.subr.mxu0 0.0
        %1080 = vmatpush1.msra.mxu0 0.0
        %1081 = vmatprep.subr.mxu0 0.0
        %1082 = vmatpush1.msra.mxu0 0.0
        %1083 = vmatprep.subr.mxu0 0.0
        %1084 = vmatpush1.msra.mxu0 %v1048
        %1085 = vmatprep.subr.mxu0 0.0
        %1086 = vmatpush2.msra.mxu0 0.0
        %1087 = vmatprep.subr.mxu0 0.0
        %1088 = vmatpush2.msra.mxu0 0.0
        %1089 = vmatprep.subr.mxu0 0.0
        %1090 = vmatpush2.msra.mxu0 0.0
        %1091 = vmatprep.subr.mxu0 0.0
        %1092 = vmatpush2.msra.mxu0 0.0
        %1093 = vmatprep.subr.mxu0 0.0
        %1094 = vmatpush2.msra.mxu0 0.0
        %1095 = vmatprep.subr.mxu0 0.0
        %1096 = vmatpush2.msra.mxu0 0.0
        %1097 = vmatprep.subr.mxu0 0.0
        %1098 = vmatpush2.msra.mxu0 0.0
        %1099 = vmatprep.subr.mxu0 0.0
        %1100 = vmatpush2.msra.mxu0 0.0
        %1101 = vmatprep.subr.mxu0 0.0
        %1102 = vmatpush2.msra.mxu0 0.0
        %1103 = vmatprep.subr.mxu0 0.0
        %1104 = vmatpush2.msra.mxu0 0.0
        %1105 = vmatprep.subr.mxu0 0.0
        %1106 = vmatpush2.msra.mxu0 0.0
        %1107 = vmatprep.subr.mxu0 0.0
        %1108 = vmatpush2.msra.mxu0 0.0
        %1109 = vmatprep.subr.mxu0 0.0
        %1110 = vmatpush2.msra.mxu0 0.0
        %1111 = vmatprep.subr.mxu0 0.0
        %1112 = vmatpush2.msra.mxu0 0.0
        %1113 = vmatprep.subr.mxu0 0.0
        %1114 = vmatpush2.msra.mxu0 0.0
        %1115 = vmatprep.subr.mxu0 0.0
        %1116 = vmatpush2.msra.mxu0 0.0
        %1117 = vmatprep.mubr.f32.mxu0 0.0
        %1118 = vmatmul.mubr.f32.gmra.mxu0 %v1051
        %v1119 = vpop.f32.mrf.mxu0
        %v1120 = vadd.f32 0.0, %v1119
        %v1121 = vpop.f32.mrf.mxu0
        %1122 = vdwg.mxu0
        %1123 = vrot.lane.b32.xlu0 %v788, 112
        %v1124 = vpop.permute.xlu0 %1123
        %1125 = vrot.lane.b32.xlu0 %v788, 80
        %v1126 = vpop.permute.xlu0 %1125
        %v1127 = vsel %vm796, %v1124, 0
        %v1129 = vsel %vm796, %v1126, 0
        %1131 = vmatprep.subr.mxu0 0.0
        %1132 = vmatpush1.xpose.msra.mxu0 0.0
        %1133 = vmatprep.subr.mxu0 0.0
        %1134 = vmatpush1.xpose.msra.mxu0 0.0
        %1135 = vmatprep.subr.mxu0 0.0
        %1136 = vmatpush1.xpose.msra.mxu0 0.0
        %1137 = vmatprep.subr.mxu0 0.0
        %1138 = vmatpush1.xpose.msra.mxu0 0.0
        %1139 = vmatprep.subr.mxu0 0.0
        %1140 = vmatpush1.xpose.msra.mxu0 0.0
        %1141 = vmatprep.subr.mxu0 0.0
        %1142 = vmatpush1.xpose.msra.mxu0 0.0
        %1143 = vmatprep.subr.mxu0 0.0
        %1144 = vmatpush1.xpose.msra.mxu0 0.0
        %1145 = vmatprep.subr.mxu0 0.0
        %1146 = vmatpush1.xpose.msra.mxu0 0.0
        %1147 = vmatprep.subr.mxu0 0.0
        %1148 = vmatpush1.xpose.msra.mxu0 0.0
        %1149 = vmatprep.subr.mxu0 0.0
        %1150 = vmatpush1.xpose.msra.mxu0 0.0
        %1151 = vmatprep.subr.mxu0 0.0
        %1152 = vmatpush1.xpose.msra.mxu0 0.0
        %1153 = vmatprep.subr.mxu0 0.0
        %1154 = vmatpush1.xpose.msra.mxu0 0.0
        %1155 = vmatprep.subr.mxu0 0.0
        %1156 = vmatpush1.xpose.msra.mxu0 0.0
        %1157 = vmatprep.subr.mxu0 0.0
        %1158 = vmatpush1.xpose.msra.mxu0 0.0
        %1159 = vmatprep.subr.mxu0 0.0
        %1160 = vmatpush1.xpose.msra.mxu0 0.0
        %1161 = vmatprep.subr.mxu0 0.0
        %1162 = vmatpush1.xpose.msra.mxu0 %v1129
        %1163 = vmatprep.subr.mxu0 0.0
        %1164 = vmatpush2.xpose.msra.mxu0 0.0
        %1165 = vmatprep.subr.mxu0 0.0
        %1166 = vmatpush2.xpose.msra.mxu0 0.0
        %1167 = vmatprep.subr.mxu0 0.0
        %1168 = vmatpush2.xpose.msra.mxu0 0.0
        %1169 = vmatprep.subr.mxu0 0.0
        %1170 = vmatpush2.xpose.msra.mxu0 0.0
        %1171 = vmatprep.subr.mxu0 0.0
        %1172 = vmatpush2.xpose.msra.mxu0 0.0
        %1173 = vmatprep.subr.mxu0 0.0
        %1174 = vmatpush2.xpose.msra.mxu0 0.0
        %1175 = vmatprep.subr.mxu0 0.0
        %1176 = vmatpush2.xpose.msra.mxu0 0.0
        %1177 = vmatprep.subr.mxu0 0.0
        %1178 = vmatpush2.xpose.msra.mxu0 0.0
        %1179 = vmatprep.subr.mxu0 0.0
        %1180 = vmatpush2.xpose.msra.mxu0 0.0
        %1181 = vmatprep.subr.mxu0 0.0
        %1182 = vmatpush2.xpose.msra.mxu0 0.0
        %1183 = vmatprep.subr.mxu0 0.0
        %1184 = vmatpush2.xpose.msra.mxu0 0.0
        %1185 = vmatprep.subr.mxu0 0.0
        %1186 = vmatpush2.xpose.msra.mxu0 0.0
        %1187 = vmatprep.subr.mxu0 0.0
        %1188 = vmatpush2.xpose.msra.mxu0 0.0
        %1189 = vmatprep.subr.mxu0 0.0
        %1190 = vmatpush2.xpose.msra.mxu0 0.0
        %1191 = vmatprep.subr.mxu0 0.0
        %1192 = vmatpush2.xpose.msra.mxu0 0.0
        %1193 = vmatprep.subr.mxu0 0.0
        %1194 = vmatpush2.xpose.msra.mxu0 0.0
        %1195 = vmatprep.mubr.f32.mxu0 0.0
        %1196 = vmatmul.mubr.f32.gmra.mxu0 %v1127
        %v1197 = vpop.f32.mrf.mxu0
        %v1198 = vadd.f32 0.0, %v1197
        %v1199 = vpop.f32.mrf.mxu0
        %1200 = vdwg.mxu0
        %v1201 = vsel %vm796, %v1198, -inf
        %1202 = vmax.xlane.f32.xlu0 %v1201
        %v1203 = vpop.xlane.xlu0 %1202
        %v1204 = vsub.f32 %v1198, %v1203
        %v1205 = vmul.f32 %v1204, 1.442695
        %v1206 = vpow.pop %v1205
        %v1207 = vsel %vm796, %v1206, 0.0
        %1208 = vadd.xlane.f32.xlu0 %v1207
        %v1209 = vpop.xlane.xlu0 %1208
        %v1210 = vrcp.pop %v1209
        %v1211 = vmul.f32 %v1206, %v1210
        %1212 = vrot.lane.b32.xlu0 %v788, 48
        %v1213 = vpop.permute.xlu0 %1212
        %v1216 = vsel %vm796, %v1211, 0
        %1218 = vmatprep.subr.mxu0 0.0
        %1219 = vmatpush1.msra.mxu0 0.0
        %1220 = vmatprep.subr.mxu0 0.0
        %1221 = vmatpush1.msra.mxu0 0.0
        %1222 = vmatprep.subr.mxu0 0.0
        %1223 = vmatpush1.msra.mxu0 0.0
        %1224 = vmatprep.subr.mxu0 0.0
        %1225 = vmatpush1.msra.mxu0 0.0
        %1226 = vmatprep.subr.mxu0 0.0
        %1227 = vmatpush1.msra.mxu0 0.0
        %1228 = vmatprep.subr.mxu0 0.0
        %1229 = vmatpush1.msra.mxu0 0.0
        %1230 = vmatprep.subr.mxu0 0.0
        %1231 = vmatpush1.msra.mxu0 0.0
        %1232 = vmatprep.subr.mxu0 0.0
        %1233 = vmatpush1.msra.mxu0 0.0
        %1234 = vmatprep.subr.mxu0 0.0
        %1235 = vmatpush1.msra.mxu0 0.0
        %1236 = vmatprep.subr.mxu0 0.0
        %1237 = vmatpush1.msra.mxu0 0.0
        %1238 = vmatprep.subr.mxu0 0.0
        %1239 = vmatpush1.msra.mxu0 0.0
        %1240 = vmatprep.subr.mxu0 0.0
        %1241 = vmatpush1.msra.mxu0 0.0
        %1242 = vmatprep.subr.mxu0 0.0
        %1243 = vmatpush1.msra.mxu0 0.0
        %1244 = vmatprep.subr.mxu0 0.0
        %1245 = vmatpush1.msra.mxu0 0.0
        %1246 = vmatprep.subr.mxu0 0.0
        %1247 = vmatpush1.msra.mxu0 0.0
        %1248 = vmatprep.subr.mxu0 0.0
        %1249 = vmatpush1.msra.mxu0 %v1213
        %1250 = vmatprep.subr.mxu0 0.0
        %1251 = vmatpush2.msra.mxu0 0.0
        %1252 = vmatprep.subr.mxu0 0.0
        %1253 = vmatpush2.msra.mxu0 0.0
        %1254 = vmatprep.subr.mxu0 0.0
        %1255 = vmatpush2.msra.mxu0 0.0
        %1256 = vmatprep.subr.mxu0 0.0
        %1257 = vmatpush2.msra.mxu0 0.0
        %1258 = vmatprep.subr.mxu0 0.0
        %1259 = vmatpush2.msra.mxu0 0.0
        %1260 = vmatprep.subr.mxu0 0.0
        %1261 = vmatpush2.msra.mxu0 0.0
        %1262 = vmatprep.subr.mxu0 0.0
        %1263 = vmatpush2.msra.mxu0 0.0
        %1264 = vmatprep.subr.mxu0 0.0
        %1265 = vmatpush2.msra.mxu0 0.0
        %1266 = vmatprep.subr.mxu0 0.0
        %1267 = vmatpush2.msra.mxu0 0.0
        %1268 = vmatprep.subr.mxu0 0.0
        %1269 = vmatpush2.msra.mxu0 0.0
        %1270 = vmatprep.subr.mxu0 0.0
        %1271 = vmatpush2.msra.mxu0 0.0
        %1272 = vmatprep.subr.mxu0 0.0
        %1273 = vmatpush2.msra.mxu0 0.0
        %1274 = vmatprep.subr.mxu0 0.0
        %1275 = vmatpush2.msra.mxu0 0.0
        %1276 = vmatprep.subr.mxu0 0.0
        %1277 = vmatpush2.msra.mxu0 0.0
        %1278 = vmatprep.subr.mxu0 0.0
        %1279 = vmatpush2.msra.mxu0 0.0
        %1280 = vmatprep.subr.mxu0 0.0
        %1281 = vmatpush2.msra.mxu0 0.0
        %1282 = vmatprep.mubr.f32.mxu0 0.0
        %1283 = vmatmul.mubr.f32.gmra.mxu0 %v1216
        %v1284 = vpop.f32.mrf.mxu0
        %v1285 = vadd.f32 0.0, %v1284
        %v1286 = vpop.f32.mrf.mxu0
        %1287 = vdwg.mxu0
        %1288 = vrot.lane.b32.xlu0 %v788, 104
        %v1289 = vpop.permute.xlu0 %1288
        %1290 = vrot.lane.b32.xlu0 %v788, 72
        %v1291 = vpop.permute.xlu0 %1290
        %v1292 = vsel %vm796, %v1289, 0
        %v1294 = vsel %vm796, %v1291, 0
        %1296 = vmatprep.subr.mxu0 0.0
        %1297 = vmatpush1.xpose.msra.mxu0 0.0
        %1298 = vmatprep.subr.mxu0 0.0
        %1299 = vmatpush1.xpose.msra.mxu0 0.0
        %1300 = vmatprep.subr.mxu0 0.0
        %1301 = vmatpush1.xpose.msra.mxu0 0.0
        %1302 = vmatprep.subr.mxu0 0.0
        %1303 = vmatpush1.xpose.msra.mxu0 0.0
        %1304 = vmatprep.subr.mxu0 0.0
        %1305 = vmatpush1.xpose.msra.mxu0 0.0
        %1306 = vmatprep.subr.mxu0 0.0
        %1307 = vmatpush1.xpose.msra.mxu0 0.0
        %1308 = vmatprep.subr.mxu0 0.0
        %1309 = vmatpush1.xpose.msra.mxu0 0.0
        %1310 = vmatprep.subr.mxu0 0.0
        %1311 = vmatpush1.xpose.msra.mxu0 0.0
        %1312 = vmatprep.subr.mxu0 0.0
        %1313 = vmatpush1.xpose.msra.mxu0 0.0
        %1314 = vmatprep.subr.mxu0 0.0
        %1315 = vmatpush1.xpose.msra.mxu0 0.0
        %1316 = vmatprep.subr.mxu0 0.0
        %1317 = vmatpush1.xpose.msra.mxu0 0.0
        %1318 = vmatprep.subr.mxu0 0.0
        %1319 = vmatpush1.xpose.msra.mxu0 0.0
        %1320 = vmatprep.subr.mxu0 0.0
        %1321 = vmatpush1.xpose.msra.mxu0 0.0
        %1322 = vmatprep.subr.mxu0 0.0
        %1323 = vmatpush1.xpose.msra.mxu0 0.0
        %1324 = vmatprep.subr.mxu0 0.0
        %1325 = vmatpush1.xpose.msra.mxu0 0.0
        %1326 = vmatprep.subr.mxu0 0.0
        %1327 = vmatpush1.xpose.msra.mxu0 %v1294
        %1328 = vmatprep.subr.mxu0 0.0
        %1329 = vmatpush2.xpose.msra.mxu0 0.0
        %1330 = vmatprep.subr.mxu0 0.0
        %1331 = vmatpush2.xpose.msra.mxu0 0.0
        %1332 = vmatprep.subr.mxu0 0.0
        %1333 = vmatpush2.xpose.msra.mxu0 0.0
        %1334 = vmatprep.subr.mxu0 0.0
        %1335 = vmatpush2.xpose.msra.mxu0 0.0
        %1336 = vmatprep.subr.mxu0 0.0
        %1337 = vmatpush2.xpose.msra.mxu0 0.0
        %1338 = vmatprep.subr.mxu0 0.0
        %1339 = vmatpush2.xpose.msra.mxu0 0.0
        %1340 = vmatprep.subr.mxu0 0.0
        %1341 = vmatpush2.xpose.msra.mxu0 0.0
        %1342 = vmatprep.subr.mxu0 0.0
        %1343 = vmatpush2.xpose.msra.mxu0 0.0
        %1344 = vmatprep.subr.mxu0 0.0
        %1345 = vmatpush2.xpose.msra.mxu0 0.0
        %1346 = vmatprep.subr.mxu0 0.0
        %1347 = vmatpush2.xpose.msra.mxu0 0.0
        %1348 = vmatprep.subr.mxu0 0.0
        %1349 = vmatpush2.xpose.msra.mxu0 0.0
        %1350 = vmatprep.subr.mxu0 0.0
        %1351 = vmatpush2.xpose.msra.mxu0 0.0
        %1352 = vmatprep.subr.mxu0 0.0
        %1353 = vmatpush2.xpose.msra.mxu0 0.0
        %1354 = vmatprep.subr.mxu0 0.0
        %1355 = vmatpush2.xpose.msra.mxu0 0.0
        %1356 = vmatprep.subr.mxu0 0.0
        %1357 = vmatpush2.xpose.msra.mxu0 0.0
        %1358 = vmatprep.subr.mxu0 0.0
        %1359 = vmatpush2.xpose.msra.mxu0 0.0
        %1360 = vmatprep.mubr.f32.mxu0 0.0
        %1361 = vmatmul.mubr.f32.gmra.mxu0 %v1292
        %v1362 = vpop.f32.mrf.mxu0
        %v1363 = vadd.f32 0.0, %v1362
        %v1364 = vpop.f32.mrf.mxu0
        %1365 = vdwg.mxu0
        %v1366 = vsel %vm796, %v1363, -inf
        %1367 = vmax.xlane.f32.xlu0 %v1366
        %v1368 = vpop.xlane.xlu0 %1367
        %v1369 = vsub.f32 %v1363, %v1368
        %v1370 = vmul.f32 %v1369, 1.442695
        %v1371 = vpow.pop %v1370
        %v1372 = vsel %vm796, %v1371, 0.0
        %1373 = vadd.xlane.f32.xlu0 %v1372
        %v1374 = vpop.xlane.xlu0 %1373
        %v1375 = vrcp.pop %v1374
        %v1376 = vmul.f32 %v1371, %v1375
        %1377 = vrot.lane.b32.xlu0 %v788, 40
        %v1378 = vpop.permute.xlu0 %1377
        %v1381 = vsel %vm796, %v1376, 0
        %1383 = vmatprep.subr.mxu0 0.0
        %1384 = vmatpush1.msra.mxu0 0.0
        %1385 = vmatprep.subr.mxu0 0.0
        %1386 = vmatpush1.msra.mxu0 0.0
        %1387 = vmatprep.subr.mxu0 0.0
        %1388 = vmatpush1.msra.mxu0 0.0
        %1389 = vmatprep.subr.mxu0 0.0
        %1390 = vmatpush1.msra.mxu0 0.0
        %1391 = vmatprep.subr.mxu0 0.0
        %1392 = vmatpush1.msra.mxu0 0.0
        %1393 = vmatprep.subr.mxu0 0.0
        %1394 = vmatpush1.msra.mxu0 0.0
        %1395 = vmatprep.subr.mxu0 0.0
        %1396 = vmatpush1.msra.mxu0 0.0
        %1397 = vmatprep.subr.mxu0 0.0
        %1398 = vmatpush1.msra.mxu0 0.0
        %1399 = vmatprep.subr.mxu0 0.0
        %1400 = vmatpush1.msra.mxu0 0.0
        %1401 = vmatprep.subr.mxu0 0.0
        %1402 = vmatpush1.msra.mxu0 0.0
        %1403 = vmatprep.subr.mxu0 0.0
        %1404 = vmatpush1.msra.mxu0 0.0
        %1405 = vmatprep.subr.mxu0 0.0
        %1406 = vmatpush1.msra.mxu0 0.0
        %1407 = vmatprep.subr.mxu0 0.0
        %1408 = vmatpush1.msra.mxu0 0.0
        %1409 = vmatprep.subr.mxu0 0.0
        %1410 = vmatpush1.msra.mxu0 0.0
        %1411 = vmatprep.subr.mxu0 0.0
        %1412 = vmatpush1.msra.mxu0 0.0
        %1413 = vmatprep.subr.mxu0 0.0
        %1414 = vmatpush1.msra.mxu0 %v1378
        %1415 = vmatprep.subr.mxu0 0.0
        %1416 = vmatpush2.msra.mxu0 0.0
        %1417 = vmatprep.subr.mxu0 0.0
        %1418 = vmatpush2.msra.mxu0 0.0
        %1419 = vmatprep.subr.mxu0 0.0
        %1420 = vmatpush2.msra.mxu0 0.0
        %1421 = vmatprep.subr.mxu0 0.0
        %1422 = vmatpush2.msra.mxu0 0.0
        %1423 = vmatprep.subr.mxu0 0.0
        %1424 = vmatpush2.msra.mxu0 0.0
        %1425 = vmatprep.subr.mxu0 0.0
        %1426 = vmatpush2.msra.mxu0 0.0
        %1427 = vmatprep.subr.mxu0 0.0
        %1428 = vmatpush2.msra.mxu0 0.0
        %1429 = vmatprep.subr.mxu0 0.0
        %1430 = vmatpush2.msra.mxu0 0.0
        %1431 = vmatprep.subr.mxu0 0.0
        %1432 = vmatpush2.msra.mxu0 0.0
        %1433 = vmatprep.subr.mxu0 0.0
        %1434 = vmatpush2.msra.mxu0 0.0
        %1435 = vmatprep.subr.mxu0 0.0
        %1436 = vmatpush2.msra.mxu0 0.0
        %1437 = vmatprep.subr.mxu0 0.0
        %1438 = vmatpush2.msra.mxu0 0.0
        %1439 = vmatprep.subr.mxu0 0.0
        %1440 = vmatpush2.msra.mxu0 0.0
        %1441 = vmatprep.subr.mxu0 0.0
        %1442 = vmatpush2.msra.mxu0 0.0
        %1443 = vmatprep.subr.mxu0 0.0
        %1444 = vmatpush2.msra.mxu0 0.0
        %1445 = vmatprep.subr.mxu0 0.0
        %1446 = vmatpush2.msra.mxu0 0.0
        %1447 = vmatprep.mubr.f32.mxu0 0.0
        %1448 = vmatmul.mubr.f32.gmra.mxu0 %v1381
        %v1449 = vpop.f32.mrf.mxu0
        %v1450 = vadd.f32 0.0, %v1449
        %v1451 = vpop.f32.mrf.mxu0
        %1452 = vdwg.mxu0
        %1454 = vrot.lane.b32.xlu0 %v1120, 8
        %v1455 = vpop.permute.xlu0 %1454
        %1458 = vrot.lane.b32.xlu0 %v1285, 16
        %v1459 = vpop.permute.xlu0 %1458
        %1462 = vrot.lane.b32.xlu0 %v1450, 24
        %v1463 = vpop.permute.xlu0 %1462
        %v1465 = vsel %vm796, %v955, %v1455
        %vm1466 = vcmask 130048
        %v1467 = vsel %vm1466, %v1465, %v1459
        %vm1468 = vcmask 195584
        %v1469 = vsel %vm1468, %v1467, %v1463
        %v1470 = vpack.c.bf16 %v1469, %v1469
        %v1471 = vld [vmem:[%s667] sm:$0xf]
        %v1472 = vld [vmem:[%s667 + $0x4] sm:$0xf]
        %v1473 = vld [vmem:[%s667 + $0x8] sm:$0xf]
        %v1474 = vld [vmem:[%s667 + $0xc] sm:$0xf]
        %v1479 = vunpack.c.l.b16 %v1471
        %v1480 = vunpack.c.l.b16 %v1472
        %v1481 = vunpack.c.l.b16 %v1473
        %v1482 = vunpack.c.l.b16 %v1474
        %v1483 = vpack.c.b16 %v1480, %v1479
        %v1484 = vpack.c.b16 %v1482, %v1481
        %v1488 = vsel %vm704, %v1470, 0
        %1490 = vmatprep.subr.bf16.mxu0 0
        %1491 = vmatpush1.bf16.msra.mxu0 0
        %1492 = vmatprep.subr.bf16.mxu0 0
        %1493 = vmatpush1.bf16.msra.mxu0 0
        %1494 = vmatprep.subr.bf16.mxu0 0
        %1495 = vmatpush1.bf16.msra.mxu0 0
        %1496 = vmatprep.subr.bf16.mxu0 0
        %1497 = vmatpush1.bf16.msra.mxu0 0
        %1498 = vmatprep.subr.bf16.mxu0 0
        %1499 = vmatpush1.bf16.msra.mxu0 0
        %1500 = vmatprep.subr.bf16.mxu0 0
        %1501 = vmatpush1.bf16.msra.mxu0 0
        %1502 = vmatprep.subr.bf16.mxu0 0
        %1503 = vmatpush1.bf16.msra.mxu0 %v1484
        %1504 = vmatprep.subr.bf16.mxu0 0
        %1505 = vmatpush1.bf16.msra.mxu0 %v1483
        %1506 = vmatprep.subr.bf16.mxu0 0
        %1507 = vmatpush2.bf16.msra.mxu0 0
        %1508 = vmatprep.subr.bf16.mxu0 0
        %1509 = vmatpush2.bf16.msra.mxu0 0
        %1510 = vmatprep.subr.bf16.mxu0 0
        %1511 = vmatpush2.bf16.msra.mxu0 0
        %1512 = vmatprep.subr.bf16.mxu0 0
        %1513 = vmatpush2.bf16.msra.mxu0 0
        %1514 = vmatprep.subr.bf16.mxu0 0
        %1515 = vmatpush2.bf16.msra.mxu0 0
        %1516 = vmatprep.subr.bf16.mxu0 0
        %1517 = vmatpush2.bf16.msra.mxu0 0
        %1518 = vmatprep.subr.bf16.mxu0 0
        %1519 = vmatpush2.bf16.msra.mxu0 0
        %1520 = vmatprep.subr.bf16.mxu0 0
        %1521 = vmatpush2.bf16.msra.mxu0 0
        %1522 = vmatprep.mubr.bf16.mxu0 0
        %1523 = vmatmul.mubr.bf16.gmra.mxu0 %v1488
        %v1524 = vpop.f32.mrf.mxu0
        %v1525 = vadd.f32 0.0, %v1524
        %v1526 = vpop.f32.mrf.mxu0
        %v1527 = vpop.f32.mrf.mxu0
        %v1528 = vpop.f32.mrf.mxu0
        %1529 = vdwg.mxu0
        %v1530 = vadd.f32 %v701, %v1525
        %v1531 = vld [vmem:[%s670] sm:$0x1]
        %v1533 = vlaneseq
        %v1534 = vshrl.u32 %v1533, 7
        %v1535 = vsub.s32 0, %v1534
        %v1536 = vrot.slane %v1531, %v1535
        %v1538 = vadd.f32 %v1530, %v1536
        %v1539 = vld [vmem:[%s673] sm:$0x1]
        %v1540 = vld [vmem:[%s676] sm:$0x1]
        %v1541 = vsel %vm704, %v1538, 0.0
        %1542 = vadd.xlane.f32.xlu0 %v1541
        %v1543 = vpop.xlane.xlu0 %1542
        %v1544 = vmul.f32 %v1543, %v708
        %v1545 = vsub.f32 %v1538, %v1544
        %v1546 = vmul.f32 %v1545, %v1545
        %v1547 = vsel %vm704, %v1546, 0.0
        %1548 = vadd.xlane.f32.xlu0 %v1547
        %v1549 = vpop.xlane.xlu0 %1548
        %v1550 = vmul.f32 %v1549, %v708
        %v1551 = vadd.f32 %v1550, 1e-05
        %v1552 = vrsqrt.pop %v1551
        %v1553 = vmul.f32 %v1545, %v1552
        %v1555 = vlaneseq
        %v1556 = vshrl.u32 %v1555, 7
        %v1557 = vsub.s32 0, %v1556
        %v1558 = vrot.slane %v1539, %v1557
        %v1560 = vmul.f32 %v1553, %v1558
        %v1562 = vlaneseq
        %v1563 = vshrl.u32 %v1562, 7
        %v1564 = vsub.s32 0, %v1563
        %v1565 = vrot.slane %v1540, %v1564
        %v1567 = vadd.f32 %v1560, %v1565
        %v1568 = vpack.c.bf16 %v1567, %v1567
        %v1569 = vld [vmem:[%s681] sm:$0xf]
        %v1570 = vld [vmem:[%s681 + $0x4] sm:$0xf]
        %v1571 = vld [vmem:[%s681 + $0x8] sm:$0xf]
        %v1572 = vld [vmem:[%s681 + $0xc] sm:$0xf]
        %v1573 = vld [vmem:[%s684] sm:$0x1]
        %v1575 = vlaneseq
        %v1576 = vshrl.u32 %v1575, 7
        %v1577 = vsub.s32 0, %v1576
        %v1578 = vrot.slane %v1573, %v1577
        %v1584 = vunpack.c.l.b16 %v1569
        %v1585 = vunpack.c.l.b16 %v1570
        %v1586 = vunpack.c.l.b16 %v1571
        %v1587 = vunpack.c.l.b16 %v1572
        %v1588 = vpack.c.b16 %v1585, %v1584
        %v1589 = vpack.c.b16 %v1587, %v1586
        %v1593 = vsel %vm704, %v1568, 0
        %1595 = vmatprep.subr.bf16.mxu0 0
        %1596 = vmatpush1.bf16.msra.mxu0 0
        %1597 = vmatprep.subr.bf16.mxu0 0
        %1598 = vmatpush1.bf16.msra.mxu0 0
        %1599 = vmatprep.subr.bf16.mxu0 0
        %1600 = vmatpush1.bf16.msra.mxu0 0
        %1601 = vmatprep.subr.bf16.mxu0 0
        %1602 = vmatpush1.bf16.msra.mxu0 0
        %1603 = vmatprep.subr.bf16.mxu0 0
        %1604 = vmatpush1.bf16.msra.mxu0 0
        %1605 = vmatprep.subr.bf16.mxu0 0
        %1606 = vmatpush1.bf16.msra.mxu0 0
        %1607 = vmatprep.subr.bf16.mxu0 0
        %1608 = vmatpush1.bf16.msra.mxu0 %v1589
        %1609 = vmatprep.subr.bf16.mxu0 0
        %1610 = vmatpush1.bf16.msra.mxu0 %v1588
        %1611 = vmatprep.subr.bf16.mxu0 0
        %1612 = vmatpush2.bf16.msra.mxu0 0
        %1613 = vmatprep.subr.bf16.mxu0 0
        %1614 = vmatpush2.bf16.msra.mxu0 0
        %1615 = vmatprep.subr.bf16.mxu0 0
        %1616 = vmatpush2.bf16.msra.mxu0 0
        %1617 = vmatprep.subr.bf16.mxu0 0
        %1618 = vmatpush2.bf16.msra.mxu0 0
        %1619 = vmatprep.subr.bf16.mxu0 0
        %1620 = vmatpush2.bf16.msra.mxu0 0
        %1621 = vmatprep.subr.bf16.mxu0 0
        %1622 = vmatpush2.bf16.msra.mxu0 0
        %1623 = vmatprep.subr.bf16.mxu0 0
        %1624 = vmatpush2.bf16.msra.mxu0 0
        %1625 = vmatprep.subr.bf16.mxu0 0
        %1626 = vmatpush2.bf16.msra.mxu0 0
        %1627 = vmatprep.mubr.bf16.mxu0 0
        %1628 = vmatmul.mubr.bf16.gmra.mxu0 %v1593
        %v1629 = vpop.f32.mrf.mxu0
        %v1630 = vadd.f32 %v1578, %v1629
        %v1631 = vpop.f32.mrf.mxu0
        %v1632 = vpop.f32.mrf.mxu0
        %v1633 = vpop.f32.mrf.mxu0
        %1634 = vdwg.mxu0
        %v1635 = vmul.f32 %v1630, 0.5
        %v1636 = vmul.f32 %v1630, 0.70710677
        %v1637 = vand.u32 2147483647, %v1636
        %v1638 = vmul.f32 %v1637, 0.3275911
        %v1639 = vadd.f32 %v1638, 1.0
        %v1640 = vrcp.pop %v1639
        %v1641 = vmul.f32 1.0, %v1640
        %v1642 = vmul.f32 %v1641, 1.0614054
        %v1643 = vsub.f32 %v1642, 1.4531521
        %v1644 = vmul.f32 %v1643, %v1641
        %v1645 = vadd.f32 %v1644, 1.4214138
        %v1646 = vmul.f32 %v1645, %v1641
        %v1647 = vsub.f32 %v1646, 0.28449672
        %v1648 = vmul.f32 %v1647, %v1641
        %v1649 = vadd.f32 %v1648, 0.2548296
        %v1650 = vmul.f32 %v1649, %v1641
        %v1651 = vsub.f32 0.0, %v1637
        %v1652 = vmul.f32 %v1651, %v1637
        %v1653 = vmul.f32 %v1652, 1.442695
        %v1654 = vpow.pop %v1653
        %v1655 = vmul.f32 %v1650, %v1654
        %v1656 = vsub.f32 1.0, %v1655
        %vm1657 = vcmp.lt.f32.partialorder %v1636, 0.0
        %v1658 = vsub.f32 0.0, %v1656
        %v1659 = vsel %vm1657, %v1658, %v1656
        %v1660 = vadd.f32 %v1659, 1.0
        %v1661 = vmul.f32 %v1635, %v1660
        %v1662 = vpack.c.bf16 %v1661, %v1661
        %v1663 = vld [vmem:[%s689] sm:$0xf]
        %v1664 = vld [vmem:[%s689 + $0x4] sm:$0xf]
        %v1665 = vld [vmem:[%s689 + $0x8] sm:$0xf]
        %v1666 = vld [vmem:[%s689 + $0xc] sm:$0xf]
        %v1667 = vld [vmem:[%s689 + $0x10] sm:$0xf]
        %v1668 = vld [vmem:[%s689 + $0x14] sm:$0xf]
        %v1669 = vld [vmem:[%s689 + $0x18] sm:$0xf]
        %v1670 = vld [vmem:[%s689 + $0x1c] sm:$0xf]
        %v1671 = vld [vmem:[%s692] sm:$0x1]
        %v1673 = vlaneseq
        %v1674 = vshrl.u32 %v1673, 7
        %v1675 = vsub.s32 0, %v1674
        %v1676 = vrot.slane %v1671, %v1675
        %v1686 = vunpack.c.l.b16 %v1663
        %v1687 = vunpack.c.l.b16 %v1664
        %v1688 = vunpack.c.l.b16 %v1665
        %v1689 = vunpack.c.l.b16 %v1666
        %v1690 = vunpack.c.l.b16 %v1667
        %v1691 = vunpack.c.l.b16 %v1668
        %v1692 = vunpack.c.l.b16 %v1669
        %v1693 = vunpack.c.l.b16 %v1670
        %v1694 = vpack.c.b16 %v1687, %v1686
        %v1695 = vpack.c.b16 %v1689, %v1688
        %v1696 = vpack.c.b16 %v1691, %v1690
        %v1697 = vpack.c.b16 %v1693, %v1692
        %vm1702 = vcmask 523264
        %v1704 = vsel %vm1702, %v1662, 0
        %1706 = vmatprep.subr.bf16.mxu0 0
        %1707 = vmatpush1.bf16.msra.mxu0 0
        %1708 = vmatprep.subr.bf16.mxu0 0
        %1709 = vmatpush1.bf16.msra.mxu0 0
        %1710 = vmatprep.subr.bf16.mxu0 0
        %1711 = vmatpush1.bf16.msra.mxu0 0
        %1712 = vmatprep.subr.bf16.mxu0 0
        %1713 = vmatpush1.bf16.msra.mxu0 0
        %1714 = vmatprep.subr.bf16.mxu0 0
        %1715 = vmatpush1.bf16.msra.mxu0 %v1697
        %1716 = vmatprep.subr.bf16.mxu0 0
        %1717 = vmatpush1.bf16.msra.mxu0 %v1696
        %1718 = vmatprep.subr.bf16.mxu0 0
        %1719 = vmatpush1.bf16.msra.mxu0 %v1695
        %1720 = vmatprep.subr.bf16.mxu0 0
        %1721 = vmatpush1.bf16.msra.mxu0 %v1694
        %1722 = vmatprep.subr.bf16.mxu0 0
        %1723 = vmatpush2.bf16.msra.mxu0 0
        %1724 = vmatprep.subr.bf16.mxu0 0
        %1725 = vmatpush2.bf16.msra.mxu0 0
        %1726 = vmatprep.subr.bf16.mxu0 0
        %1727 = vmatpush2.bf16.msra.mxu0 0
        %1728 = vmatprep.subr.bf16.mxu0 0
        %1729 = vmatpush2.bf16.msra.mxu0 0
        %1730 = vmatprep.subr.bf16.mxu0 0
        %1731 = vmatpush2.bf16.msra.mxu0 0
        %1732 = vmatprep.subr.bf16.mxu0 0
        %1733 = vmatpush2.bf16.msra.mxu0 0
        %1734 = vmatprep.subr.bf16.mxu0 0
        %1735 = vmatpush2.bf16.msra.mxu0 0
        %1736 = vmatprep.subr.bf16.mxu0 0
        %1737 = vmatpush2.bf16.msra.mxu0 0
        %1738 = vmatprep.mubr.bf16.mxu0 0
        %1739 = vmatmul.mubr.bf16.gmra.mxu0 %v1704
        %v1740 = vpop.f32.mrf.mxu0
        %v1741 = vadd.f32 %v1676, %v1740
        %v1742 = vpop.f32.mrf.mxu0
        %v1743 = vpop.f32.mrf.mxu0
        %v1744 = vpop.f32.mrf.mxu0
        %1745 = vdwg.mxu0
        %v1746 = vadd.f32 %v1538, %v1741
        %1747 = vst.msk [vmem:[#allocation2] sm:$0xff] %vm704, %v1746
        %p1748 = scmp.eq.s32.totalorder %s39, 1
        // Predicated region
        $region89: #{tpu_custom_call.1} parent=75 // pred_check
          %p1749 = pneg %p1748
        $region90: #{tpu_custom_call.1} parent=75 // pred_check_branch
          %1751 = sbr.rel (%p1749) target = $region92
        $region91: #{tpu_custom_call.1} parent=75 // pred_region
          %v1752 = vld [vmem:[%s12] sm:$0x1]
          %v1753 = vld [vmem:[%s13] sm:$0x1]
          %v1754 = vsel %vm704, %v1746, 0.0
          %1755 = vadd.xlane.f32.xlu0 %v1754
          %v1756 = vpop.xlane.xlu0 %1755
          %v1757 = vmul.f32 %v1756, %v708
          %v1758 = vsub.f32 %v1746, %v1757
          %v1759 = vmul.f32 %v1758, %v1758
          %v1760 = vsel %vm704, %v1759, 0.0
          %1761 = vadd.xlane.f32.xlu0 %v1760
          %v1762 = vpop.xlane.xlu0 %1761
          %v1763 = vmul.f32 %v1762, %v708
          %v1764 = vadd.f32 %v1763, 1e-05
          %v1765 = vrsqrt.pop %v1764
          %v1766 = vmul.f32 %v1758, %v1765
          %v1768 = vlaneseq
          %v1769 = vshrl.u32 %v1768, 7
          %v1770 = vsub.s32 0, %v1769
          %v1771 = vrot.slane %v1752, %v1770
          %v1773 = vmul.f32 %v1766, %v1771
          %v1775 = vlaneseq
          %v1776 = vshrl.u32 %v1775, 7
          %v1777 = vsub.s32 0, %v1776
          %v1778 = vrot.slane %v1753, %v1777
          %v1780 = vadd.f32 %v1773, %v1778
          %1781 = vst.msk [vmem:[%s654] sm:$0xff] %vm704, %v1780
        $region92: #{tpu_custom_call.1} parent=75 // pred_fallthru
          _
        %s1782 = sand.u32 %s408, 1
        %s1783 = scalar_lea.sflag [#allocation5], %s1782
        %s1784 = sand.u32 %s408, 1
        %s1785 = smul.addr %s1784, 8
        %s1786 = scalar_lea.vmem [#allocation8], %s1785
        // Predicated region
        $region93: #{tpu_custom_call.1} parent=75 // pred_check
          %p1787 = pneg %p418
        $region94: #{tpu_custom_call.1} parent=75 // pred_check_branch
          %1789 = sbr.rel (%p1787) target = $region96
        $region95: #{tpu_custom_call.1} parent=75 // pred_region
          %s1791 = ssub.s32 128, 128
          %1792 = vsyncadd %s1783, %s1791
          %s1793 = smul.addr %s38, 128
          %s1794 = scalar_lea.hbm %s14, %s1793
          %s1796 = sshll.u32 %s1786, 4
          %s1797 = int_to_ptr.vmem [resolvable:$true] %s1796
          %1799 = dma.vmem_to_hbm [thread:$0]  %s1797, 128, %s1794, %s1783
        $region96: #{tpu_custom_call.1} parent=75 // pred_fallthru
          _
      $region76: #{tpu_custom_call.1} parent=5 // pred_fallthru
        _
      %p1800 = scmp.le.s32.totalorder 2, %s29
      // Predicated region
      $region97: #{tpu_custom_call.1} parent=5 // pred_check
        %p1801 = pneg %p1800
      $region98: #{tpu_custom_call.1} parent=5 // pred_check_branch
        %1803 = sbr.rel (%p1801) target = $region100
      $region99: #{tpu_custom_call.1} parent=5 // pred_region
        %s1804 = ssub.s32 %s29, 2
        // Predicated region
        $region101: #{tpu_custom_call.1} parent=99 // pred_check
          %p1805 = pneg %p424
        $region102: #{tpu_custom_call.1} parent=99 // pred_check_branch
          %1807 = sbr.rel (%p1805) target = $region104
        $region103: #{tpu_custom_call.1} parent=99 // pred_region
          %s1808 = sand.u32 %s409, 1
          %s1809 = scalar_lea.sflag [#allocation5], %s1808
          %s1810 = sand.u32 %s409, 1
          %s1811 = smul.addr %s1810, 8
          %s1812 = scalar_lea.vmem [#allocation8], %s1811
          %1813 = dma.done %s1809, 128
        $region104: #{tpu_custom_call.1} parent=99 // pred_fallthru
          _
      $region100: #{tpu_custom_call.1} parent=5 // pred_fallthru
        _
    $region6: #{tpu_custom_call.1} parent=1 // loop_footer
      %s33 = sadd.s32 1, %s29
    $region7: #{tpu_custom_call.1} parent=1 // loop_footer_branch
      %28 = sbr.rel target = $region3
    $region8: #{tpu_custom_call.1} parent=1 // loop_exit
      _
    %1814 = vsyncpa [#allocation4], 1
    %s1815 = scalar_lea.sflag [#allocation4], 1
    %1816 = vsyncpa %s1815, 1
    %1817 = vsyncpa [#allocation7], 1
    %s1818 = scalar_lea.sflag [#allocation7], 1
    %1819 = vsyncpa %s1818, 1
    %1820 = vsyncpa [#allocation5], 1
    %s1821 = scalar_lea.sflag [#allocation5], 1
    %1822 = vsyncpa %s1821, 1

</llo_original>
